<compile_context>
chip_gen: v5e
topology: v5e:2x2
jax: 0.10.0
libtpu: 0.0.40
codegen_flags: <defaults>
</compile_context>

<pallas_src>
import functools

import jax
import jax.numpy as jnp
from jax import lax
from jax.experimental import pallas as pl
from jax.experimental.pallas import tpu as pltpu


# ---------------------------------------------------------------------------
# Fused kernel.  Grid = (N_tiles,) over the conv output columns.
#   step 0      : Linear -> GroupNorm(1 ch/group) -> LeakyReLU -> bf16 scratch
#   every step  : one lane-dense conv matmul slab  a_scratch @ conv_g[:, j-tile]
# ---------------------------------------------------------------------------
def fused_bottleneck_kernel(x_ref,    # (B, K)          f32  VMEM (full, fetched once)
                            lw_ref,   # (K, flat)       bf16 VMEM (full, fetched once)
                            lb_ref,   # (1, flat)       f32  VMEM
                            gb_ref,   # (2, flat)       f32  VMEM  row0=gamma/lane row1=beta/lane
                            cg_ref,   # (flat, block_n) bf16 VMEM  folded-conv slab (streamed)
                            cb_ref,   # (1, block_n)    f32  VMEM  conv bias slab  (streamed)
                            o_ref,    # (B, block_n)    f32  VMEM  output slab
                            a_ref):   # (B, flat)       bf16 VMEM scratch (persists across steps)
    j = pl.program_id(0)
    B, flat = a_ref.shape
    dhw = flat // 2                       # Cin == model_depth // 2 == 2 (one channel per GN group)

    @pl.when(j == 0)
    def _linear_gn_lrelu():
        # ---- out_of_bert: Linear (bf16 operands, f32 MXU accumulation) ----
        xb = x_ref[...].astype(jnp.bfloat16)                           # VPU cast, in-kernel
        y = jnp.dot(xb, lw_ref[...],
                    preferred_element_type=jnp.float32) + lb_ref[...]  # (B, flat) f32

        # ---- GroupNorm(num_groups == num_channels == 2) ----
        # channel 0 = lanes [0, dhw), channel 1 = lanes [dhw, 2*dhw).
        lane = lax.broadcasted_iota(jnp.int32, (B, flat), 1)
        in_c1 = lane >= dhw
        inv_n = 1.0 / float(dhw)

        s_all = jnp.sum(y, axis=-1, keepdims=True)
        s_c0 = jnp.sum(jnp.where(in_c1, 0.0, y), axis=-1, keepdims=True)
        mu = jnp.where(in_c1, (s_all - s_c0) * inv_n, s_c0 * inv_n)

        diff = y - mu
        sq = diff * diff
        q_all = jnp.sum(sq, axis=-1, keepdims=True)
        q_c0 = jnp.sum(jnp.where(in_c1, 0.0, sq), axis=-1, keepdims=True)
        var = jnp.where(in_c1, (q_all - q_c0) * inv_n, q_c0 * inv_n)   # biased var (PyTorch)

        # single per-lane scale/shift (gamma/beta prepacked per lane)
        z = diff * lax.rsqrt(var + 1e-5) * gb_ref[0:1, :] + gb_ref[1:2, :]
        a = jnp.where(z >= 0.0, z, 0.01 * z)                           # LeakyReLU(0.01)
        a_ref[...] = a.astype(jnp.bfloat16)

    # ---- convR0 slab: Conv3d(3x3x3, pad=1) folded to a lane-dense matmul ----
    out = jnp.dot(a_ref[...], cg_ref[...], preferred_element_type=jnp.float32)
    o_ref[...] = out + cb_ref[...]


# ---------------------------------------------------------------------------
# One-time weight prepacking (bf16 cast, per-lane GN affine, conv -> matrix fold)
# ---------------------------------------------------------------------------
def prepare_params(params, dim_3, model_depth=4):
    D, H, W = dim_3
    Cin = model_depth // 2
    Cout = model_depth * 8
    dhw = D * H * W
    flat = Cin * dhw

    lw = params["lin_w"].astype(jnp.bfloat16)                    # (K, flat), no K padding
    lb = params["lin_b"].reshape(1, flat).astype(jnp.float32)

    # Per-lane GroupNorm affine rows: lane l belongs to channel l // dhw.
    ch = jnp.arange(flat) // dhw
    gb = jnp.stack([params["gn_gamma"][ch], params["gn_beta"][ch]]).astype(jnp.float32)  # (2, flat)

    # Fold Conv3d(Cin->Cout, k=3, stride 1, pad 1) into G with
    #   G[ci*dhw + i, co*dhw + j] = conv_w[co, ci, di-dj+1, hi-hj+1, wi-wj+1]  (or 0),
    # so conv(a) == a_flat @ G with a_flat in PyTorch Unflatten order (B, Cin*DHW).
    # NOTE: regenerate whenever dim_3 / conv hyperparameters change (stale-fold guard
    # is the shape assert in bottleneck_out_forward).
    idx = jnp.arange(dhw)
    d_i = idx // (H * W)
    h_i = (idx // W) % H
    w_i = idx % W
    kd = d_i[:, None] - d_i[None, :] + 1
    kh = h_i[:, None] - h_i[None, :] + 1
    kw = w_i[:, None] - w_i[None, :] + 1
    valid = (kd >= 0) & (kd < 3) & (kh >= 0) & (kh < 3) & (kw >= 0) & (kw < 3)
    wv = params["conv_w"][:, :, jnp.clip(kd, 0, 2), jnp.clip(kh, 0, 2), jnp.clip(kw, 0, 2)]
    wv = wv * valid[None, None, :, :].astype(wv.dtype)           # (Cout, Cin, dhw, dhw)
    conv_g = jnp.transpose(wv, (1, 2, 0, 3)).reshape(flat, Cout * dhw).astype(jnp.bfloat16)
    conv_b = jnp.repeat(params["conv_b"].astype(jnp.float32), dhw).reshape(1, Cout * dhw)

    return {
        "lin_w": lw, "lin_b": lb, "gb": gb, "conv_g": conv_g, "conv_b": conv_b,
        "dims": (D, H, W), "Cin": Cin, "Cout": Cout, "dhw": dhw, "K": lw.shape[0],
    }


# ---------------------------------------------------------------------------
# Forward pass matching BottleNeck_out.forward (one pallas_call + reshape)
# ---------------------------------------------------------------------------
def bottleneck_out_forward(x, packed, block_n=512):
    B, K = x.shape
    D, H, W = packed["dims"]
    Cin, Cout, dhw = packed["Cin"], packed["Cout"], packed["dhw"]
    flat = Cin * dhw
    N = Cout * dhw
    assert K == packed["K"], "packed weights are stale for this input width"

    block_n = min(block_n, N)
    if N % block_n != 0 or block_n % 128 != 0:
        block_n = N                                   # fall back to a single slab
    n_steps = N // block_n

    flops = 2 * B * K * flat + 2 * B * flat * N
    bytes_accessed = (B * K * 4 + K * flat * 2 + flat * 4 + 2 * flat * 4
                      + flat * N * 2 + N * 4 + B * N * 4)

    grid_spec = pltpu.PrefetchScalarGridSpec(
        num_scalar_prefetch=0,
        grid=(n_steps,),
        in_specs=[
            pl.BlockSpec((B, K), lambda j: (0, 0)),            # x        (fetched once)
            pl.BlockSpec((K, flat), lambda j: (0, 0)),         # lin_w    (fetched once)
            pl.BlockSpec((1, flat), lambda j: (0, 0)),         # lin_b
            pl.BlockSpec((2, flat), lambda j: (0, 0)),         # gb
            pl.BlockSpec((flat, block_n), lambda j: (0, j)),   # conv_g   (streamed slabs)
            pl.BlockSpec((1, block_n), lambda j: (0, j)),      # conv_b   (streamed slabs)
        ],
        out_specs=pl.BlockSpec((B, block_n), lambda j: (0, j)),
        scratch_shapes=[pltpu.VMEM((B, flat), jnp.bfloat16)],  # GN/LeakyReLU activation
    )

    out2d = pl.pallas_call(
        fused_bottleneck_kernel,
        out_shape=jax.ShapeDtypeStruct((B, N), jnp.float32),
        grid_spec=grid_spec,
        compiler_params=pltpu.CompilerParams(
            # step 0 writes the scratch that later steps read -> sequential axis.
            dimension_semantics=("arbitrary",)),
        cost_estimate=pl.CostEstimate(flops=flops, transcendentals=B * Cin,
                                      bytes_accessed=bytes_accessed),
    )(x, packed["lin_w"], packed["lin_b"], packed["gb"],
      packed["conv_g"], packed["conv_b"])

    # (B, Cout*DHW) is already NCDHW-contiguous -> plain reshape, no transpose.
    return out2d.reshape(B, Cout, D, H, W)


# ---------------------------------------------------------------------------
# Pure-JAX f32 reference (faithful to the PyTorch module) for correctness check
# ---------------------------------------------------------------------------
def reference_forward(x, params, dim_3, model_depth=4):
    D, H, W = dim_3
    Cin = model_depth // 2
    B = x.shape[0]
    y = jnp.dot(x, params["lin_w"], precision=lax.Precision.HIGHEST) + params["lin_b"]
    a = y.reshape(B, Cin, D, H, W)
    g = a.reshape(B, 2, -1)                                   # 2 groups (== 2 channels)
    m = g.mean(-1, keepdims=True)
    v = ((g - m) ** 2).mean(-1, keepdims=True)
    an = ((g - m) / jnp.sqrt(v + 1e-5)).reshape(B, Cin, D, H, W)
    an = an * params["gn_gamma"][None, :, None, None, None] \
            + params["gn_beta"][None, :, None, None, None]
    an = jnp.where(an >= 0, an, 0.01 * an)
    out = lax.conv_general_dilated(
        an, params["conv_w"], window_strides=(1, 1, 1),
        padding=((1, 1), (1, 1), (1, 1)),
        dimension_numbers=("NCDHW", "OIDHW", "NCDHW"),
        precision=lax.Precision.HIGHEST)
    return out + params["conv_b"][None, :, None, None, None]


if __name__ == "__main__":
    B = 2
    intermediate_vec = 2640           # fixed by register_vars
    model_depth = 4
    dim_3 = (4, 4, 4)                 # small synthetic encoder output shape (shapes['dim_3'])
    D, H, W = dim_3
    Cin = model_depth // 2            # 2
    Cout = model_depth * 8            # 32
    flat = Cin * D * H * W            # out_of_bert output features

    key = jax.random.PRNGKey(0)
    ks = jax.random.split(key, 7)
    params = {
        "lin_w": jax.random.normal(ks[0], (intermediate_vec, flat), jnp.float32) * 0.02,
        "lin_b": jax.random.normal(ks[1], (flat,), jnp.float32) * 0.02,
        "gn_gamma": 1.0 + 0.1 * jax.random.normal(ks[2], (Cin,), jnp.float32),
        "gn_beta": 0.1 * jax.random.normal(ks[3], (Cin,), jnp.float32),
        "conv_w": jax.random.normal(ks[4], (Cout, Cin, 3, 3, 3), jnp.float32) * 0.05,
        "conv_b": jax.random.normal(ks[5], (Cout,), jnp.float32) * 0.02,
    }
    x = jax.random.normal(ks[6], (B, intermediate_vec), jnp.float32)

    packed = prepare_params(params, dim_3, model_depth)       # one-time weight prepack
    fwd = jax.jit(functools.partial(bottleneck_out_forward, packed=packed))

    out = jax.block_until_ready(fwd(x))
    ref = reference_forward(x, params, dim_3, model_depth)

    assert out.shape == (B, Cout, D, H, W), out.shape
    err = float(jnp.max(jnp.abs(out - ref)))
    # bf16 weight/activation storage (f32 accumulation) -> loosened tolerance vs f32 reference.
    assert jnp.allclose(out, ref, atol=3e-2, rtol=3e-2), f"max abs err {err}"
    print("KERNEL_OK")
</pallas_src>

<mosaic_0001>
module attributes {stable_mosaic.version = 11 : i64} {
  func.func @fused_bottleneck_kernel(%arg0: i32, %arg1: memref<2x2640xf32, #tpu.memory_space<vmem>>, %arg2: memref<2640x128xbf16, #tpu.memory_space<vmem>>, %arg3: memref<1x128xf32, #tpu.memory_space<vmem>>, %arg4: memref<2x128xf32, #tpu.memory_space<vmem>>, %arg5: memref<128x512xbf16, #tpu.memory_space<vmem>>, %arg6: memref<1x512xf32, #tpu.memory_space<vmem>>, %arg7: memref<2x512xf32, #tpu.memory_space<vmem>>, %arg8: memref<2x128xbf16, #tpu.memory_space<vmem>>) attributes {dimension_semantics = [#tpu.dimension_semantics<arbitrary>], iteration_bounds = array<i64: 4>, scalar_prefetch = 0 : i64, scratch_operands = 1 : i64, tpu.core_type = #tpu.core_type<tc>, window_params = [{pipeline_mode = #tpu.pipeline_mode<synchronous>, transform_indices = @transform_0, window_bounds = array<i64: 2, 2640>}, {pipeline_mode = #tpu.pipeline_mode<synchronous>, transform_indices = @transform_1, window_bounds = array<i64: 2640, 128>}, {pipeline_mode = #tpu.pipeline_mode<synchronous>, transform_indices = @transform_2, window_bounds = array<i64: 1, 128>}, {pipeline_mode = #tpu.pipeline_mode<synchronous>, transform_indices = @transform_3, window_bounds = array<i64: 2, 128>}, {transform_indices = @transform_4, window_bounds = array<i64: 128, 512>}, {transform_indices = @transform_5, window_bounds = array<i64: 1, 512>}, {transform_indices = @transform_6, window_bounds = array<i64: 2, 512>}]} {
    %c0_i32 = arith.constant 0 : i32
    %0 = arith.cmpi eq, %arg0, %c0_i32 : i32
    %1 = arith.extui %0 : i1 to i32
    %c0_i32_0 = arith.constant 0 : i32
    %2 = arith.cmpi ne, %1, %c0_i32_0 : i32
    scf.if %2 {
      %c0_8 = arith.constant 0 : index
      %c0_9 = arith.constant 0 : index
      %10 = vector.load %arg1[%c0_8, %c0_9] : memref<2x2640xf32, #tpu.memory_space<vmem>>, vector<2x2640xf32>
      %11 = arith.truncf %10 : vector<2x2640xf32> to vector<2x2640xbf16>
      %c0_10 = arith.constant 0 : index
      %c0_11 = arith.constant 0 : index
      %12 = vector.load %arg2[%c0_10, %c0_11] : memref<2640x128xbf16, #tpu.memory_space<vmem>>, vector<2640x128xbf16>
      %cst_12 = arith.constant dense<0.000000e+00> : vector<2x128xf32>
      %13 = tpu.matmul %11, %12, %cst_12 {dimension_numbers = #tpu.dot_dimension_numbers<[1], [0], [0], [1], [0, 0, 1, 1], [], []>} : vector<2x2640xbf16>, vector<2640x128xbf16>, vector<2x128xf32> -> vector<2x128xf32>
      %c0_13 = arith.constant 0 : index
      %c0_14 = arith.constant 0 : index
      %14 = vector.load %arg3[%c0_13, %c0_14] : memref<1x128xf32, #tpu.memory_space<vmem>>, vector<1x128xf32>
      %15 = vector.broadcast %14 : vector<1x128xf32> to vector<2x128xf32>
      %16 = arith.addf %13, %15 : vector<2x128xf32>
      %17 = tpu.iota {dimensions = array<i32: 1>} : vector<2x128xi32>
      %c64_i32 = arith.constant 64 : i32
      %18 = vector.broadcast %c64_i32 : i32 to vector<2x128xi32>
      %19 = arith.cmpi sge, %17, %18 : vector<2x128xi32>
      %cst_15 = arith.constant dense<0.000000e+00> : vector<2xf32>
      %20 = vector.multi_reduction <add>, %16, %cst_15 [1] : vector<2x128xf32> to vector<2xf32>
      %21 = vector.shape_cast %20 : vector<2xf32> to vector<2x1xf32>
      %cst_16 = arith.constant 0.000000e+00 : f32
      %22 = vector.broadcast %cst_16 : f32 to vector<2x128xf32>
      %23 = arith.select %19, %22, %16 : vector<2x128xi1>, vector<2x128xf32>
      %cst_17 = arith.constant dense<0.000000e+00> : vector<2xf32>
      %24 = vector.multi_reduction <add>, %23, %cst_17 [1] : vector<2x128xf32> to vector<2xf32>
      %25 = vector.shape_cast %24 : vector<2xf32> to vector<2x1xf32>
      %26 = arith.subf %21, %25 : vector<2x1xf32>
      %cst_18 = arith.constant 1.562500e-02 : f32
      %27 = vector.broadcast %cst_18 : f32 to vector<2x1xf32>
      %28 = arith.mulf %26, %27 : vector<2x1xf32>
      %cst_19 = arith.constant 1.562500e-02 : f32
      %29 = vector.broadcast %cst_19 : f32 to vector<2x1xf32>
      %30 = arith.mulf %25, %29 : vector<2x1xf32>
      %31 = vector.shape_cast %28 : vector<2x1xf32> to vector<2x1xf32>
      %32 = vector.broadcast %31 : vector<2x1xf32> to vector<2x128xf32>
      %33 = vector.shape_cast %30 : vector<2x1xf32> to vector<2x1xf32>
      %34 = vector.broadcast %33 : vector<2x1xf32> to vector<2x128xf32>
      %35 = arith.select %19, %32, %34 : vector<2x128xi1>, vector<2x128xf32>
      %36 = arith.subf %16, %35 : vector<2x128xf32>
      %37 = arith.mulf %36, %36 : vector<2x128xf32>
      %cst_20 = arith.constant dense<0.000000e+00> : vector<2xf32>
      %38 = vector.multi_reduction <add>, %37, %cst_20 [1] : vector<2x128xf32> to vector<2xf32>
      %39 = vector.shape_cast %38 : vector<2xf32> to vector<2x1xf32>
      %cst_21 = arith.constant 0.000000e+00 : f32
      %40 = vector.broadcast %cst_21 : f32 to vector<2x128xf32>
      %41 = arith.select %19, %40, %37 : vector<2x128xi1>, vector<2x128xf32>
      %cst_22 = arith.constant dense<0.000000e+00> : vector<2xf32>
      %42 = vector.multi_reduction <add>, %41, %cst_22 [1] : vector<2x128xf32> to vector<2xf32>
      %43 = vector.shape_cast %42 : vector<2xf32> to vector<2x1xf32>
      %44 = arith.subf %39, %43 : vector<2x1xf32>
      %cst_23 = arith.constant 1.562500e-02 : f32
      %45 = vector.broadcast %cst_23 : f32 to vector<2x1xf32>
      %46 = arith.mulf %44, %45 : vector<2x1xf32>
      %cst_24 = arith.constant 1.562500e-02 : f32
      %47 = vector.broadcast %cst_24 : f32 to vector<2x1xf32>
      %48 = arith.mulf %43, %47 : vector<2x1xf32>
      %49 = vector.shape_cast %46 : vector<2x1xf32> to vector<2x1xf32>
      %50 = vector.broadcast %49 : vector<2x1xf32> to vector<2x128xf32>
      %51 = vector.shape_cast %48 : vector<2x1xf32> to vector<2x1xf32>
      %52 = vector.broadcast %51 : vector<2x1xf32> to vector<2x128xf32>
      %53 = arith.select %19, %50, %52 : vector<2x128xi1>, vector<2x128xf32>
      %cst_25 = arith.constant 9.99999974E-6 : f32
      %54 = vector.broadcast %cst_25 : f32 to vector<2x128xf32>
      %55 = arith.addf %53, %54 : vector<2x128xf32>
      %56 = math.rsqrt %55 : vector<2x128xf32>
      %57 = arith.mulf %36, %56 : vector<2x128xf32>
      %c0_26 = arith.constant 0 : index
      %c0_27 = arith.constant 0 : index
      %58 = vector.load %arg4[%c0_26, %c0_27] : memref<2x128xf32, #tpu.memory_space<vmem>>, vector<1x128xf32>
      %59 = vector.broadcast %58 : vector<1x128xf32> to vector<2x128xf32>
      %60 = arith.mulf %57, %59 : vector<2x128xf32>
      %c1 = arith.constant 1 : index
      %c0_28 = arith.constant 0 : index
      %61 = vector.load %arg4[%c1, %c0_28] : memref<2x128xf32, #tpu.memory_space<vmem>>, vector<1x128xf32>
      %62 = vector.broadcast %61 : vector<1x128xf32> to vector<2x128xf32>
      %63 = arith.addf %60, %62 : vector<2x128xf32>
      %cst_29 = arith.constant 0.000000e+00 : f32
      %64 = vector.broadcast %cst_29 : f32 to vector<2x128xf32>
      %65 = arith.cmpf oge, %63, %64 : vector<2x128xf32>
      %cst_30 = arith.constant 0.00999999977 : f32
      %66 = vector.broadcast %cst_30 : f32 to vector<2x128xf32>
      %67 = arith.mulf %66, %63 : vector<2x128xf32>
      %68 = arith.select %65, %63, %67 : vector<2x128xi1>, vector<2x128xf32>
      %69 = arith.truncf %68 : vector<2x128xf32> to vector<2x128xbf16>
      %c0_31 = arith.constant 0 : index
      %c0_32 = arith.constant 0 : index
      %70 = vector.load %arg8[%c0_31, %c0_32] : memref<2x128xbf16, #tpu.memory_space<vmem>>, vector<2x128xbf16>
      tpu.vector_store %arg8[%c0_31, %c0_32], %69 {strides = array<i32>} : memref<2x128xbf16, #tpu.memory_space<vmem>>, vector<2x128xbf16>,
    } else {
    }
    %c0 = arith.constant 0 : index
    %c0_1 = arith.constant 0 : index
    %3 = vector.load %arg8[%c0, %c0_1] : memref<2x128xbf16, #tpu.memory_space<vmem>>, vector<2x128xbf16>
    %c0_2 = arith.constant 0 : index
    %c0_3 = arith.constant 0 : index
    %4 = vector.load %arg5[%c0_2, %c0_3] : memref<128x512xbf16, #tpu.memory_space<vmem>>, vector<128x512xbf16>
    %cst = arith.constant dense<0.000000e+00> : vector<2x512xf32>
    %5 = tpu.matmul %3, %4, %cst {dimension_numbers = #tpu.dot_dimension_numbers<[1], [0], [0], [1], [0, 0, 1, 1], [], []>} : vector<2x128xbf16>, vector<128x512xbf16>, vector<2x512xf32> -> vector<2x512xf32>
    %c0_4 = arith.constant 0 : index
    %c0_5 = arith.constant 0 : index
    %6 = vector.load %arg6[%c0_4, %c0_5] : memref<1x512xf32, #tpu.memory_space<vmem>>, vector<1x512xf32>
    %7 = vector.broadcast %6 : vector<1x512xf32> to vector<2x512xf32>
    %8 = arith.addf %5, %7 : vector<2x512xf32>
    %c0_6 = arith.constant 0 : index
    %c0_7 = arith.constant 0 : index
    %9 = vector.load %arg7[%c0_6, %c0_7] : memref<2x512xf32, #tpu.memory_space<vmem>>, vector<2x512xf32>
    tpu.vector_store %arg7[%c0_6, %c0_7], %8 {strides = array<i32>} : memref<2x512xf32, #tpu.memory_space<vmem>>, vector<2x512xf32>,
    return
  }
  func.func @transform_0(%arg0: i32) -> (i32, i32) {
    %c0_i32 = arith.constant 0 : i32
    %c0_i32_0 = arith.constant 0 : i32
    %c0_i32_1 = arith.constant 0 : i32
    return %c0_i32, %c0_i32_0 : i32, i32
  }
  func.func @transform_1(%arg0: i32) -> (i32, i32) {
    %c0_i32 = arith.constant 0 : i32
    %c0_i32_0 = arith.constant 0 : i32
    %c0_i32_1 = arith.constant 0 : i32
    return %c0_i32, %c0_i32_0 : i32, i32
  }
  func.func @transform_2(%arg0: i32) -> (i32, i32) {
    %c0_i32 = arith.constant 0 : i32
    %c0_i32_0 = arith.constant 0 : i32
    %c0_i32_1 = arith.constant 0 : i32
    return %c0_i32, %c0_i32_0 : i32, i32
  }
  func.func @transform_3(%arg0: i32) -> (i32, i32) {
    %c0_i32 = arith.constant 0 : i32
    %c0_i32_0 = arith.constant 0 : i32
    %c0_i32_1 = arith.constant 0 : i32
    return %c0_i32, %c0_i32_0 : i32, i32
  }
  func.func @transform_4(%arg0: i32) -> (i32, i32) {
    %c0_i32 = arith.constant 0 : i32
    %c0_i32_0 = arith.constant 0 : i32
    return %c0_i32, %arg0 : i32, i32
  }
  func.func @transform_5(%arg0: i32) -> (i32, i32) {
    %c0_i32 = arith.constant 0 : i32
    %c0_i32_0 = arith.constant 0 : i32
    return %c0_i32, %arg0 : i32, i32
  }
  func.func @transform_6(%arg0: i32) -> (i32, i32) {
    %c0_i32 = arith.constant 0 : i32
    %c0_i32_0 = arith.constant 0 : i32
    return %c0_i32, %arg0 : i32, i32
  }
}

</mosaic_0001>

<llo_original>
// kernel: bottleneck_out_forward.1
$region0: #{bottleneck_out_forward.1}
  #allocation0 [shape = 'u32[]', space=smem, size = 0x4, offset = 0x4, fixed_abs, tag = 'smem constant byte address 0x4 - core index']
  #allocation1 [shape = 'u32[72,128]{1,0:T(1,128)}', space=vmem, size = 0x9000, scoped, tag = 'internal scratch']
  #allocation2 [shape = 'bf16[2,128]{1,0:T(2,128)(2,1)}', space=vmem, size = 0x200, scoped, tag = 'scratch operand']
  %s0 = inlined_call_operand.hbm [shape: f32[2,2640], index: 0, kind: input, shape index: {}]
  %s1 = inlined_call_operand.hbm [shape: bf16[2640,128], index: 1, kind: input, shape index: {}]
  %s2 = inlined_call_operand.hbm [shape: f32[1,128], index: 2, kind: input, shape index: {}]
  %s3 = inlined_call_operand.vmem [shape: f32[2,128], index: 3, kind: input, shape index: {}]
  %s4 = inlined_call_operand.hbm [shape: bf16[128,2048], index: 4, kind: input, shape index: {}]
  %s5 = inlined_call_operand.hbm [shape: f32[1,2048], index: 5, kind: input, shape index: {}]
  %s6 = inlined_call_operand.vmem [shape: f32[2,2048], index: 6, kind: output, shape index: {}]
  %s7 = sld [smem:[#allocation0]]
  $region81: #{bottleneck_out_forward.1} parent=0
    _
  %s9 = ssub.s32 1, %s7
  %s10 = scalar_select 0, %s9, %s7
  $region1: #{bottleneck_out_forward.1} parent=0
    #allocation3 [shape = 'u8[21504]{0}', space=vmem, size = 0x5400, scoped, tag = 'input window, operand 0, single buffered']
    #allocation4 [shape = 's32[2]{0}', space=sflag, size = 0x8, scoped, tag = 'scoped memory for bottleneck_out_forward.1']
    #allocation5 [shape = 'u8[675840]{0}', space=vmem, size = 0xa5000, scoped, tag = 'input window, operand 1, single buffered']
    #allocation6 [shape = 's32[1]{0}', space=sflag, size = 0x4, scoped, tag = 'scoped memory for bottleneck_out_forward.1']
    #allocation7 [shape = 'u8[512]{0}', space=vmem, size = 0x400, scoped, tag = 'input window, operand 2, single buffered']
    #allocation8 [shape = 'u8[262144]{0}', space=vmem, size = 0x40000, scoped, tag = 'input window, operand 4']
    #allocation9 [shape = 's32[2]{0}', space=sflag, size = 0x8, scoped, tag = 'scoped memory for bottleneck_out_forward.1']
    #allocation10 [shape = 'u8[4096]{0}', space=vmem, size = 0x1000, scoped, tag = 'input window, operand 5']
    %11 = vsyncpa [#allocation4], 0
    %12 = vsyncpa [#allocation6], 0
    %13 = vsyncpa [#allocation9], 0
    %s14 = scalar_lea.sflag [#allocation9], 1
    %15 = vsyncpa %s14, 0
    loop: start=0, step=1, limit=6
    $region2: #{bottleneck_out_forward.1} parent=1 // loop_pre_header
      _
    $region3: #{bottleneck_out_forward.1} parent=1 // loop_header
      %s17 = sphi 0, %s21
      %p18 = scmp.ge.s32.totalorder %s17, 6
      %s25 = sphi 0, %s25
      %s27 = sphi 0, %s25
      %s28 = sphi 0, %s27
      %s42 = sphi 0, %s28
      %s46 = sphi 0, %s46
      %s48 = sphi 0, %s46
      %s49 = sphi 0, %s48
      %s63 = sphi 0, %s49
      %s67 = sphi 0, %s67
      %s69 = sphi 0, %s67
      %s70 = sphi 0, %s69
      %s84 = sphi 0, %s70
      %s88 = sphi 0, %s88
      %s90 = sphi 0, %s88
      %s91 = sphi 0, %s90
      %s105 = sphi 0, %s91
      %s111 = sphi 0, %s113
      %s114 = sphi 0, %s111
      %s115 = sphi 0, %s114
      %s131 = sphi 0, %s115
      %s137 = sphi 0, %s139
      %s140 = sphi 0, %s137
      %s141 = sphi 0, %s140
      %s157 = sphi 0, %s141
      %s163 = sphi 0, %s165
      %s166 = sphi 0, %s163
      %s167 = sphi 0, %s166
      %s183 = sphi 0, %s167
    $region4: #{bottleneck_out_forward.1} parent=1 // loop_header_branch
      %20 = sbr.rel (%p18) target = $region8
    $region5: #{bottleneck_out_forward.1} parent=1 // loop_body
      %s22 = ssub.s32 %s17, 1
      %s23 = ssub.s32 %s17, 2
      %s24 = sadd.s32 %s17, 1
      %s26 = sadd.s32 %s25, 1
      %p29 = scmp.eq.s32.totalorder %s17, 3
      %p30 = scmp.ne.s32.totalorder %s25, %s27
      %p31 = scmp.eq.s32.totalorder %s17, 0
      %p32 = por %p30, %p31
      %p33 = scmp.ne.s32.totalorder %s25, %s27
      %p34 = scmp.eq.s32.totalorder %s22, 3
      %p35 = por %p33, %p34
      %p36 = scmp.ne.s32.totalorder %s27, %s28
      %p37 = scmp.eq.s32.totalorder %s22, 0
      %p38 = por %p36, %p37
      %p39 = scmp.ne.s32.totalorder %s27, %s28
      %p40 = scmp.eq.s32.totalorder %s23, 3
      %p41 = por %p39, %p40
      %p43 = scmp.ne.s32.totalorder %s28, %s42
      %p44 = scmp.eq.s32.totalorder %s23, 0
      %p45 = por %p43, %p44
      %s47 = sadd.s32 %s46, 1
      %p50 = scmp.eq.s32.totalorder %s17, 3
      %p51 = scmp.ne.s32.totalorder %s46, %s48
      %p52 = scmp.eq.s32.totalorder %s17, 0
      %p53 = por %p51, %p52
      %p54 = scmp.ne.s32.totalorder %s46, %s48
      %p55 = scmp.eq.s32.totalorder %s22, 3
      %p56 = por %p54, %p55
      %p57 = scmp.ne.s32.totalorder %s48, %s49
      %p58 = scmp.eq.s32.totalorder %s22, 0
      %p59 = por %p57, %p58
      %p60 = scmp.ne.s32.totalorder %s48, %s49
      %p61 = scmp.eq.s32.totalorder %s23, 3
      %p62 = por %p60, %p61
      %p64 = scmp.ne.s32.totalorder %s49, %s63
      %p65 = scmp.eq.s32.totalorder %s23, 0
      %p66 = por %p64, %p65
      %s68 = sadd.s32 %s67, 1
      %p71 = scmp.eq.s32.totalorder %s17, 3
      %p72 = scmp.ne.s32.totalorder %s67, %s69
      %p73 = scmp.eq.s32.totalorder %s17, 0
      %p74 = por %p72, %p73
      %p75 = scmp.ne.s32.totalorder %s67, %s69
      %p76 = scmp.eq.s32.totalorder %s22, 3
      %p77 = por %p75, %p76
      %p78 = scmp.ne.s32.totalorder %s69, %s70
      %p79 = scmp.eq.s32.totalorder %s22, 0
      %p80 = por %p78, %p79
      %p81 = scmp.ne.s32.totalorder %s69, %s70
      %p82 = scmp.eq.s32.totalorder %s23, 3
      %p83 = por %p81, %p82
      %p85 = scmp.ne.s32.totalorder %s70, %s84
      %p86 = scmp.eq.s32.totalorder %s23, 0
      %p87 = por %p85, %p86
      %s89 = sadd.s32 %s88, 1
      %p92 = scmp.eq.s32.totalorder %s17, 3
      %p93 = scmp.ne.s32.totalorder %s88, %s90
      %p94 = scmp.eq.s32.totalorder %s17, 0
      %p95 = por %p93, %p94
      %p96 = scmp.ne.s32.totalorder %s88, %s90
      %p97 = scmp.eq.s32.totalorder %s22, 3
      %p98 = por %p96, %p97
      %p99 = scmp.ne.s32.totalorder %s90, %s91
      %p100 = scmp.eq.s32.totalorder %s22, 0
      %p101 = por %p99, %p100
      %p102 = scmp.ne.s32.totalorder %s90, %s91
      %p103 = scmp.eq.s32.totalorder %s23, 3
      %p104 = por %p102, %p103
      %p106 = scmp.ne.s32.totalorder %s91, %s105
      %p107 = scmp.eq.s32.totalorder %s23, 0
      %p108 = por %p106, %p107
      %s109 = ssub.s32 %s17, %s24
      %p110 = scmp.eq.s32.totalorder %s109, 0
      %s112 = sadd.s32 %s111, 1
      %s113 = scalar_select %p110, %s111, %s112
      %p116 = pneg %p110
      %p117 = scmp.eq.s32.totalorder %s17, 3
      %p118 = por %p116, %p117
      %p119 = scmp.ne.s32.totalorder %s111, %s114
      %p120 = scmp.eq.s32.totalorder %s17, 0
      %p121 = por %p119, %p120
      %p122 = scmp.ne.s32.totalorder %s111, %s114
      %p123 = scmp.eq.s32.totalorder %s22, 3
      %p124 = por %p122, %p123
      %p125 = scmp.ne.s32.totalorder %s114, %s115
      %p126 = scmp.eq.s32.totalorder %s22, 0
      %p127 = por %p125, %p126
      %p128 = scmp.ne.s32.totalorder %s114, %s115
      %p129 = scmp.eq.s32.totalorder %s23, 3
      %p130 = por %p128, %p129
      %p132 = scmp.ne.s32.totalorder %s115, %s131
      %p133 = scmp.eq.s32.totalorder %s23, 0
      %p134 = por %p132, %p133
      %s135 = ssub.s32 %s17, %s24
      %p136 = scmp.eq.s32.totalorder %s135, 0
      %s138 = sadd.s32 %s137, 1
      %s139 = scalar_select %p136, %s137, %s138
      %p142 = pneg %p136
      %p143 = scmp.eq.s32.totalorder %s17, 3
      %p144 = por %p142, %p143
      %p145 = scmp.ne.s32.totalorder %s137, %s140
      %p146 = scmp.eq.s32.totalorder %s17, 0
      %p147 = por %p145, %p146
      %p148 = scmp.ne.s32.totalorder %s137, %s140
      %p149 = scmp.eq.s32.totalorder %s22, 3
      %p150 = por %p148, %p149
      %p151 = scmp.ne.s32.totalorder %s140, %s141
      %p152 = scmp.eq.s32.totalorder %s22, 0
      %p153 = por %p151, %p152
      %p154 = scmp.ne.s32.totalorder %s140, %s141
      %p155 = scmp.eq.s32.totalorder %s23, 3
      %p156 = por %p154, %p155
      %p158 = scmp.ne.s32.totalorder %s141, %s157
      %p159 = scmp.eq.s32.totalorder %s23, 0
      %p160 = por %p158, %p159
      %s161 = ssub.s32 %s17, %s24
      %p162 = scmp.eq.s32.totalorder %s161, 0
      %s164 = sadd.s32 %s163, 1
      %s165 = scalar_select %p162, %s163, %s164
      %p168 = pneg %p162
      %p169 = scmp.eq.s32.totalorder %s17, 3
      %p170 = por %p168, %p169
      %p171 = scmp.ne.s32.totalorder %s163, %s166
      %p172 = scmp.eq.s32.totalorder %s17, 0
      %p173 = por %p171, %p172
      %p174 = scmp.ne.s32.totalorder %s163, %s166
      %p175 = scmp.eq.s32.totalorder %s22, 3
      %p176 = por %p174, %p175
      %p177 = scmp.ne.s32.totalorder %s166, %s167
      %p178 = scmp.eq.s32.totalorder %s22, 0
      %p179 = por %p177, %p178
      %p180 = scmp.ne.s32.totalorder %s166, %s167
      %p181 = scmp.eq.s32.totalorder %s23, 3
      %p182 = por %p180, %p181
      %p184 = scmp.ne.s32.totalorder %s167, %s183
      %p185 = scmp.eq.s32.totalorder %s23, 0
      %p186 = por %p184, %p185
      %p187 = scmp.le.s32.totalorder 1, %s17
      %p188 = scmp.lt.s32.totalorder %s17, 5
      %p189 = pnand %p187, %p188
      %p190 = pneg %p189
      // Predicated region
      $region9: #{bottleneck_out_forward.1} parent=5 // pred_check
        _
      $region10: #{bottleneck_out_forward.1} parent=5 // pred_check_branch
        %192 = sbr.rel (%p189) target = $region12
      $region11: #{bottleneck_out_forward.1} parent=5 // pred_region
        %s193 = ssub.s32 %s17, 1
        // Predicated region
        $region13: #{bottleneck_out_forward.1} parent=11 // pred_check
          %p194 = pneg %p38
        $region14: #{bottleneck_out_forward.1} parent=11 // pred_check_branch
          %196 = sbr.rel (%p194) target = $region16
        $region15: #{bottleneck_out_forward.1} parent=11 // pred_region
          %198 = vsyncadd [#allocation4], 0
          %s200 = sshll.u32 %s0, 4
          %s201 = int_to_ptr.hbm [resolvable:$true] %s200
          %s202 = sshll.u32 [#allocation3], 4
          %s203 = int_to_ptr.vmem [resolvable:$true] %s202
          %205 = dma.hbm_to_vmem [thread:$0]  %s201, 672, %s203, [#allocation4]
        $region16: #{bottleneck_out_forward.1} parent=11 // pred_fallthru
          _
        // Predicated region
        $region17: #{bottleneck_out_forward.1} parent=11 // pred_check
          %p206 = pneg %p59
        $region18: #{bottleneck_out_forward.1} parent=11 // pred_check_branch
          %208 = sbr.rel (%p206) target = $region20
        $region19: #{bottleneck_out_forward.1} parent=11 // pred_region
          %210 = vsyncadd [#allocation6], 0
          %s211 = sshll.u32 %s1, 4
          %s212 = int_to_ptr.hbm [resolvable:$true] %s211
          %s213 = sshll.u32 [#allocation5], 4
          %s214 = int_to_ptr.vmem [resolvable:$true] %s213
          %219 = dma.hbm_to_vmem [thread:$0]  %s212, 21120, %s214, [#allocation6], 64, 64, 4
        $region20: #{bottleneck_out_forward.1} parent=11 // pred_fallthru
          _
        // Predicated region
        $region21: #{bottleneck_out_forward.1} parent=11 // pred_check
          %p220 = pneg %p80
        $region22: #{bottleneck_out_forward.1} parent=11 // pred_check_branch
          %222 = sbr.rel (%p220) target = $region24
        $region23: #{bottleneck_out_forward.1} parent=11 // pred_region
          %224 = vsyncadd [#allocation6], 0
          %s226 = sshll.u32 %s2, 4
          %s227 = int_to_ptr.hbm [resolvable:$true] %s226
          %s228 = sshll.u32 [#allocation7], 4
          %s229 = int_to_ptr.vmem [resolvable:$true] %s228
          %231 = dma.hbm_to_vmem [thread:$0]  %s227, 16, %s229, [#allocation6]
        $region24: #{bottleneck_out_forward.1} parent=11 // pred_fallthru
          _
        // Predicated region
        $region25: #{bottleneck_out_forward.1} parent=11 // pred_check
          %p232 = pneg %p101
        $region26: #{bottleneck_out_forward.1} parent=11 // pred_check_branch
          %234 = sbr.rel (%p232) target = $region28
        $region27: #{bottleneck_out_forward.1} parent=11 // pred_region
          _
        $region28: #{bottleneck_out_forward.1} parent=11 // pred_fallthru
          _
      $region12: #{bottleneck_out_forward.1} parent=5 // pred_fallthru
        _
      %p235 = scmp.lt.s32.totalorder %s17, 4
      // Predicated region
      $region29: #{bottleneck_out_forward.1} parent=5 // pred_check
        %p236 = pneg %p235
      $region30: #{bottleneck_out_forward.1} parent=5 // pred_check_branch
        %238 = sbr.rel (%p236) target = $region32
      $region31: #{bottleneck_out_forward.1} parent=5 // pred_region
        // Predicated region
        $region33: #{bottleneck_out_forward.1} parent=31 // pred_check
          %p239 = pneg %p121
        $region34: #{bottleneck_out_forward.1} parent=31 // pred_check_branch
          %241 = sbr.rel (%p239) target = $region36
        $region35: #{bottleneck_out_forward.1} parent=31 // pred_region
          %s242 = sand.u32 %s17, 1
          %s243 = scalar_lea.sflag [#allocation9], %s242
          %s244 = sand.u32 %s111, 1
          %s245 = smul.addr %s244, 256
          %s246 = scalar_lea.vmem [#allocation8], %s245
          %s247 = smul.u32 4, %s17
          %249 = vsyncadd %s243, 0
          %s250 = smul.addr %s247, 4
          %s251 = scalar_lea.hbm %s4, %s250
          %s252 = sshll.u32 %s251, 4
          %s253 = int_to_ptr.hbm [resolvable:$true] %s252
          %s254 = sshll.u32 %s246, 4
          %s255 = int_to_ptr.vmem [resolvable:$true] %s254
          %260 = dma.hbm_to_vmem [thread:$0]  %s253, 4096, %s255, %s243, 1024, 256, 16
        $region36: #{bottleneck_out_forward.1} parent=31 // pred_fallthru
          _
        // Predicated region
        $region37: #{bottleneck_out_forward.1} parent=31 // pred_check
          %p261 = pneg %p147
        $region38: #{bottleneck_out_forward.1} parent=31 // pred_check_branch
          %263 = sbr.rel (%p261) target = $region40
        $region39: #{bottleneck_out_forward.1} parent=31 // pred_region
          %s264 = sand.u32 %s17, 1
          %s265 = scalar_lea.sflag [#allocation9], %s264
          %s266 = sand.u32 %s137, 1
          %s267 = smul.addr %s266, 4
          %s268 = scalar_lea.vmem [#allocation10], %s267
          %s269 = smul.u32 4, %s17
          %271 = vsyncadd %s265, 0
          %s272 = scalar_lea.hbm %s5, %s269
          %s274 = sshll.u32 %s272, 4
          %s275 = int_to_ptr.hbm [resolvable:$true] %s274
          %s276 = sshll.u32 %s268, 4
          %s277 = int_to_ptr.vmem [resolvable:$true] %s276
          %279 = dma.hbm_to_vmem [thread:$0]  %s275, 64, %s277, %s265
        $region40: #{bottleneck_out_forward.1} parent=31 // pred_fallthru
          _
      $region32: #{bottleneck_out_forward.1} parent=5 // pred_fallthru
        _
      %p280 = scmp.le.s32.totalorder 1, %s17
      %p281 = scmp.lt.s32.totalorder %s17, 5
      %p282 = pnand %p280, %p281
      %p283 = pneg %p282
      // Predicated region
      $region41: #{bottleneck_out_forward.1} parent=5 // pred_check
        _
      $region42: #{bottleneck_out_forward.1} parent=5 // pred_check_branch
        %285 = sbr.rel (%p282) target = $region44
      $region43: #{bottleneck_out_forward.1} parent=5 // pred_region
        %s286 = ssub.s32 %s17, 1
        // Predicated region
        $region45: #{bottleneck_out_forward.1} parent=43 // pred_check
          %p287 = pneg %p38
        $region46: #{bottleneck_out_forward.1} parent=43 // pred_check_branch
          %289 = sbr.rel (%p287) target = $region48
        $region47: #{bottleneck_out_forward.1} parent=43 // pred_region
          %291 = dma.done [#allocation4], 672
        $region48: #{bottleneck_out_forward.1} parent=43 // pred_fallthru
          _
        // Predicated region
        $region49: #{bottleneck_out_forward.1} parent=43 // pred_check
          %p292 = pneg %p59
        $region50: #{bottleneck_out_forward.1} parent=43 // pred_check_branch
          %294 = sbr.rel (%p292) target = $region52
        $region51: #{bottleneck_out_forward.1} parent=43 // pred_region
          %296 = dma.done [#allocation6], 21120
        $region52: #{bottleneck_out_forward.1} parent=43 // pred_fallthru
          _
        // Predicated region
        $region53: #{bottleneck_out_forward.1} parent=43 // pred_check
          %p297 = pneg %p80
        $region54: #{bottleneck_out_forward.1} parent=43 // pred_check_branch
          %299 = sbr.rel (%p297) target = $region56
        $region55: #{bottleneck_out_forward.1} parent=43 // pred_region
          %301 = dma.done [#allocation6], 16
        $region56: #{bottleneck_out_forward.1} parent=43 // pred_fallthru
          _
        %s302 = sand.u32 %s22, 1
        %s303 = scalar_lea.sflag [#allocation9], %s302
        %s304 = sand.u32 %s114, 1
        %s305 = smul.addr %s304, 256
        %s306 = scalar_lea.vmem [#allocation8], %s305
        // Predicated region
        $region57: #{bottleneck_out_forward.1} parent=43 // pred_check
          %p307 = pneg %p127
        $region58: #{bottleneck_out_forward.1} parent=43 // pred_check_branch
          %309 = sbr.rel (%p307) target = $region60
        $region59: #{bottleneck_out_forward.1} parent=43 // pred_region
          %311 = dma.done %s303, 4096
        $region60: #{bottleneck_out_forward.1} parent=43 // pred_fallthru
          _
        %s312 = sand.u32 %s22, 1
        %s313 = scalar_lea.sflag [#allocation9], %s312
        %s314 = sand.u32 %s140, 1
        %s315 = smul.addr %s314, 4
        %s316 = scalar_lea.vmem [#allocation10], %s315
        // Predicated region
        $region61: #{bottleneck_out_forward.1} parent=43 // pred_check
          %p317 = pneg %p153
        $region62: #{bottleneck_out_forward.1} parent=43 // pred_check_branch
          %319 = sbr.rel (%p317) target = $region64
        $region63: #{bottleneck_out_forward.1} parent=43 // pred_region
          %321 = dma.done %s313, 64
        $region64: #{bottleneck_out_forward.1} parent=43 // pred_fallthru
          _
        %p322 = pneg %p38
        %p323 = pneg %p35
        %p324 = pneg %p59
        %p325 = pneg %p56
        %p326 = pneg %p80
        %p327 = pneg %p77
        %p328 = pneg %p101
        %p329 = pneg %p98
        %s330 = sand.u32 %s22, 1
        %s331 = scalar_lea.sflag [#allocation9], %s330
        %s332 = sand.u32 %s114, 1
        %s333 = smul.addr %s332, 256
        %s334 = scalar_lea.vmem [#allocation8], %s333
        %p335 = pneg %p127
        %p336 = pneg %p124
        %s337 = sand.u32 %s22, 1
        %s338 = scalar_lea.sflag [#allocation9], %s337
        %s339 = sand.u32 %s140, 1
        %s340 = smul.addr %s339, 4
        %s341 = scalar_lea.vmem [#allocation10], %s340
        %p342 = pneg %p153
        %p343 = pneg %p150
        %p344 = pneg %p179
        %p345 = pneg %p176
        %s346 = smul.u32 4, %s22
        %p347 = scmp.lt.s32.totalorder %s346, 15
        %s348 = scalar_select %p347, %s346, 15
        %s349 = smul.addr %s348, 2
        %s350 = scalar_lea.vmem %s6, %s349
        %s351 = smul.u32 4, %s22
        %s352 = smul.u32 4, %s22
        %s353 = smul.u32 4, %s22
        %p354 = scmp.lt.s32.totalorder %s353, 15
        %s355 = scalar_select %p354, %s353, 15
        %s356 = smul.addr %s355, 2
        %s357 = scalar_lea.vmem %s6, %s356
        %s358 = smul.u32 4, %s22
        %p360 = scmp.eq.s32.totalorder %s22, 0
        // Predicated region
        $region65: #{bottleneck_out_forward.1} parent=43 // pred_check
          %p361 = pneg %p360
        $region66: #{bottleneck_out_forward.1} parent=43 // pred_check_branch
          %363 = sbr.rel (%p361) target = $region68
        $region67: #{bottleneck_out_forward.1} parent=43 // pred_region
          %v364 = vld [vmem:[#allocation3] sm:$0xff]
          %v365 = vld [vmem:[#allocation3 + $0x8] sm:$0xff]
          %v366 = vld [vmem:[#allocation3 + $0x10] sm:$0xff]
          %v367 = vld [vmem:[#allocation3 + $0x18] sm:$0xff]
          %v368 = vld [vmem:[#allocation3 + $0x20] sm:$0xff]
          %v369 = vld [vmem:[#allocation3 + $0x28] sm:$0x3]
          %376 = vst [vmem:[#allocation1] ss:$4 sm:$0xff] %v364
          %s377 = scalar_lea.vmem [#allocation1], 32
          %378 = vst [vmem:[%s377] ss:$4 sm:$0xff] %v365
          %v379 = vld.sshfl [vmem:[#allocation1] sm:$0xff pattern:$0x73625140]
          %v380 = vld.sshfl [vmem:[#allocation1 + $0x8] sm:$0xff pattern:$0x73625140]
          %v381 = vld.sshfl [vmem:[#allocation1 + $0x10] sm:$0xff pattern:$0x73625140]
          %v382 = vld.sshfl [vmem:[#allocation1 + $0x18] sm:$0xff pattern:$0x73625140]
          %v383 = vld.sshfl [vmem:[#allocation1 + $0x20] sm:$0xff pattern:$0x73625140]
          %v384 = vld.sshfl [vmem:[#allocation1 + $0x28] sm:$0xff pattern:$0x73625140]
          %v385 = vld.sshfl [vmem:[#allocation1 + $0x30] sm:$0xff pattern:$0x73625140]
          %v386 = vld.sshfl [vmem:[#allocation1 + $0x38] sm:$0xff pattern:$0x73625140]
          %387 = vst [vmem:[#allocation1] ss:$4 sm:$0xff] %v366
          %388 = vst [vmem:[%s377] ss:$4 sm:$0xff] %v367
          %v389 = vld.sshfl [vmem:[#allocation1] sm:$0xff pattern:$0x73625140]
          %v390 = vld.sshfl [vmem:[#allocation1 + $0x8] sm:$0xff pattern:$0x73625140]
          %v391 = vld.sshfl [vmem:[#allocation1 + $0x10] sm:$0xff pattern:$0x73625140]
          %v392 = vld.sshfl [vmem:[#allocation1 + $0x18] sm:$0xff pattern:$0x73625140]
          %v393 = vld.sshfl [vmem:[#allocation1 + $0x20] sm:$0xff pattern:$0x73625140]
          %v394 = vld.sshfl [vmem:[#allocation1 + $0x28] sm:$0xff pattern:$0x73625140]
          %v395 = vld.sshfl [vmem:[#allocation1 + $0x30] sm:$0xff pattern:$0x73625140]
          %v396 = vld.sshfl [vmem:[#allocation1 + $0x38] sm:$0xff pattern:$0x73625140]
          %397 = vst [vmem:[#allocation1] ss:$4 sm:$0xff] %v368
          %398 = vst [vmem:[%s377] ss:$4 sm:$0xff] %v369
          %v399 = vld.sshfl [vmem:[#allocation1] sm:$0xff pattern:$0x73625140]
          %v400 = vld.sshfl [vmem:[#allocation1 + $0x8] sm:$0xff pattern:$0x73625140]
          %v401 = vld.sshfl [vmem:[#allocation1 + $0x10] sm:$0xff pattern:$0x73625140]
          %v402 = vld.sshfl [vmem:[#allocation1 + $0x18] sm:$0xff pattern:$0x73625140]
          %v403 = vld.sshfl [vmem:[#allocation1 + $0x20] sm:$0xff pattern:$0x73625140]
          %v425 = vpack.c.bf16 %v379, %v379
          %v426 = vpack.c.bf16 %v380, %v380
          %v427 = vpack.c.bf16 %v381, %v381
          %v428 = vpack.c.bf16 %v382, %v382
          %v429 = vpack.c.bf16 %v383, %v383
          %v430 = vpack.c.bf16 %v384, %v384
          %v431 = vpack.c.bf16 %v385, %v385
          %v432 = vpack.c.bf16 %v386, %v386
          %v433 = vpack.c.bf16 %v389, %v389
          %v434 = vpack.c.bf16 %v390, %v390
          %v435 = vpack.c.bf16 %v391, %v391
          %v436 = vpack.c.bf16 %v392, %v392
          %v437 = vpack.c.bf16 %v393, %v393
          %v438 = vpack.c.bf16 %v394, %v394
          %v439 = vpack.c.bf16 %v395, %v395
          %v440 = vpack.c.bf16 %v396, %v396
          %v441 = vpack.c.bf16 %v399, %v399
          %v442 = vpack.c.bf16 %v400, %v400
          %v443 = vpack.c.bf16 %v401, %v401
          %v444 = vpack.c.bf16 %v402, %v402
          %v445 = vpack.c.bf16 %v403, %v403
          %v446 = vld [vmem:[#allocation5] sm:$0xf]
          %v447 = vld [vmem:[#allocation5 + $0x4] sm:$0xf]
          %v448 = vld [vmem:[#allocation5 + $0x8] sm:$0xf]
          %v449 = vld [vmem:[#allocation5 + $0xc] sm:$0xf]
          %v450 = vld [vmem:[#allocation5 + $0x10] sm:$0xf]
          %v451 = vld [vmem:[#allocation5 + $0x14] sm:$0xf]
          %v452 = vld [vmem:[#allocation5 + $0x18] sm:$0xf]
          %v453 = vld [vmem:[#allocation5 + $0x1c] sm:$0xf]
          %v454 = vld [vmem:[#allocation5 + $0x20] sm:$0xf]
          %v455 = vld [vmem:[#allocation5 + $0x24] sm:$0xf]
          %v456 = vld [vmem:[#allocation5 + $0x28] sm:$0xf]
          %v457 = vld [vmem:[#allocation5 + $0x2c] sm:$0xf]
          %v458 = vld [vmem:[#allocation5 + $0x30] sm:$0xf]
          %v459 = vld [vmem:[#allocation5 + $0x34] sm:$0xf]
          %v460 = vld [vmem:[#allocation5 + $0x38] sm:$0xf]
          %v461 = vld [vmem:[#allocation5 + $0x3c] sm:$0xf]
          %v462 = vld [vmem:[#allocation5 + $0x40] sm:$0xf]
          %v463 = vld [vmem:[#allocation5 + $0x44] sm:$0xf]
          %v464 = vld [vmem:[#allocation5 + $0x48] sm:$0xf]
          %v465 = vld [vmem:[#allocation5 + $0x4c] sm:$0xf]
          %v466 = vld [vmem:[#allocation5 + $0x50] sm:$0xf]
          %v467 = vld [vmem:[#allocation5 + $0x54] sm:$0xf]
          %v468 = vld [vmem:[#allocation5 + $0x58] sm:$0xf]
          %v469 = vld [vmem:[#allocation5 + $0x5c] sm:$0xf]
          %v470 = vld [vmem:[#allocation5 + $0x60] sm:$0xf]
          %v471 = vld [vmem:[#allocation5 + $0x64] sm:$0xf]
          %v472 = vld [vmem:[#allocation5 + $0x68] sm:$0xf]
          %v473 = vld [vmem:[#allocation5 + $0x6c] sm:$0xf]
          %v474 = vld [vmem:[#allocation5 + $0x70] sm:$0xf]
          %v475 = vld [vmem:[#allocation5 + $0x74] sm:$0xf]
          %v476 = vld [vmem:[#allocation5 + $0x78] sm:$0xf]
          %v477 = vld [vmem:[#allocation5 + $0x7c] sm:$0xf]
          %v478 = vld [vmem:[#allocation5 + $0x80] sm:$0xf]
          %v479 = vld [vmem:[#allocation5 + $0x84] sm:$0xf]
          %v480 = vld [vmem:[#allocation5 + $0x88] sm:$0xf]
          %v481 = vld [vmem:[#allocation5 + $0x8c] sm:$0xf]
          %v482 = vld [vmem:[#allocation5 + $0x90] sm:$0xf]
          %v483 = vld [vmem:[#allocation5 + $0x94] sm:$0xf]
          %v484 = vld [vmem:[#allocation5 + $0x98] sm:$0xf]
          %v485 = vld [vmem:[#allocation5 + $0x9c] sm:$0xf]
          %v486 = vld [vmem:[#allocation5 + $0xa0] sm:$0xf]
          %v487 = vld [vmem:[#allocation5 + $0xa4] sm:$0xf]
          %v488 = vld [vmem:[#allocation5 + $0xa8] sm:$0xf]
          %v489 = vld [vmem:[#allocation5 + $0xac] sm:$0xf]
          %v490 = vld [vmem:[#allocation5 + $0xb0] sm:$0xf]
          %v491 = vld [vmem:[#allocation5 + $0xb4] sm:$0xf]
          %v492 = vld [vmem:[#allocation5 + $0xb8] sm:$0xf]
          %v493 = vld [vmem:[#allocation5 + $0xbc] sm:$0xf]
          %v494 = vld [vmem:[#allocation5 + $0xc0] sm:$0xf]
          %v495 = vld [vmem:[#allocation5 + $0xc4] sm:$0xf]
          %v496 = vld [vmem:[#allocation5 + $0xc8] sm:$0xf]
          %v497 = vld [vmem:[#allocation5 + $0xcc] sm:$0xf]
          %v498 = vld [vmem:[#allocation5 + $0xd0] sm:$0xf]
          %v499 = vld [vmem:[#allocation5 + $0xd4] sm:$0xf]
          %v500 = vld [vmem:[#allocation5 + $0xd8] sm:$0xf]
          %v501 = vld [vmem:[#allocation5 + $0xdc] sm:$0xf]
          %v502 = vld [vmem:[#allocation5 + $0xe0] sm:$0xf]
          %v503 = vld [vmem:[#allocation5 + $0xe4] sm:$0xf]
          %v504 = vld [vmem:[#allocation5 + $0xe8] sm:$0xf]
          %v505 = vld [vmem:[#allocation5 + $0xec] sm:$0xf]
          %v506 = vld [vmem:[#allocation5 + $0xf0] sm:$0xf]
          %v507 = vld [vmem:[#allocation5 + $0xf4] sm:$0xf]
          %v508 = vld [vmem:[#allocation5 + $0xf8] sm:$0xf]
          %v509 = vld [vmem:[#allocation5 + $0xfc] sm:$0xf]
          %v510 = vld [vmem:[#allocation5 + $0x100] sm:$0xf]
          %v511 = vld [vmem:[#allocation5 + $0x104] sm:$0xf]
          %v512 = vld [vmem:[#allocation5 + $0x108] sm:$0xf]
          %v513 = vld [vmem:[#allocation5 + $0x10c] sm:$0xf]
          %v514 = vld [vmem:[#allocation5 + $0x110] sm:$0xf]
          %v515 = vld [vmem:[#allocation5 + $0x114] sm:$0xf]
          %v516 = vld [vmem:[#allocation5 + $0x118] sm:$0xf]
          %v517 = vld [vmem:[#allocation5 + $0x11c] sm:$0xf]
          %v518 = vld [vmem:[#allocation5 + $0x120] sm:$0xf]
          %v519 = vld [vmem:[#allocation5 + $0x124] sm:$0xf]
          %v520 = vld [vmem:[#allocation5 + $0x128] sm:$0xf]
          %v521 = vld [vmem:[#allocation5 + $0x12c] sm:$0xf]
          %v522 = vld [vmem:[#allocation5 + $0x130] sm:$0xf]
          %v523 = vld [vmem:[#allocation5 + $0x134] sm:$0xf]
          %v524 = vld [vmem:[#allocation5 + $0x138] sm:$0xf]
          %v525 = vld [vmem:[#allocation5 + $0x13c] sm:$0xf]
          %v526 = vld [vmem:[#allocation5 + $0x140] sm:$0xf]
          %v527 = vld [vmem:[#allocation5 + $0x144] sm:$0xf]
          %v528 = vld [vmem:[#allocation5 + $0x148] sm:$0xf]
          %v529 = vld [vmem:[#allocation5 + $0x14c] sm:$0xf]
          %v530 = vld [vmem:[#allocation5 + $0x150] sm:$0xf]
          %v531 = vld [vmem:[#allocation5 + $0x154] sm:$0xf]
          %v532 = vld [vmem:[#allocation5 + $0x158] sm:$0xf]
          %v533 = vld [vmem:[#allocation5 + $0x15c] sm:$0xf]
          %v534 = vld [vmem:[#allocation5 + $0x160] sm:$0xf]
          %v535 = vld [vmem:[#allocation5 + $0x164] sm:$0xf]
          %v536 = vld [vmem:[#allocation5 + $0x168] sm:$0xf]
          %v537 = vld [vmem:[#allocation5 + $0x16c] sm:$0xf]
          %v538 = vld [vmem:[#allocation5 + $0x170] sm:$0xf]
          %v539 = vld [vmem:[#allocation5 + $0x174] sm:$0xf]
          %v540 = vld [vmem:[#allocation5 + $0x178] sm:$0xf]
          %v541 = vld [vmem:[#allocation5 + $0x17c] sm:$0xf]
          %v542 = vld [vmem:[#allocation5 + $0x180] sm:$0xf]
          %v543 = vld [vmem:[#allocation5 + $0x184] sm:$0xf]
          %v544 = vld [vmem:[#allocation5 + $0x188] sm:$0xf]
          %v545 = vld [vmem:[#allocation5 + $0x18c] sm:$0xf]
          %v546 = vld [vmem:[#allocation5 + $0x190] sm:$0xf]
          %v547 = vld [vmem:[#allocation5 + $0x194] sm:$0xf]
          %v548 = vld [vmem:[#allocation5 + $0x198] sm:$0xf]
          %v549 = vld [vmem:[#allocation5 + $0x19c] sm:$0xf]
          %v550 = vld [vmem:[#allocation5 + $0x1a0] sm:$0xf]
          %v551 = vld [vmem:[#allocation5 + $0x1a4] sm:$0xf]
          %v552 = vld [vmem:[#allocation5 + $0x1a8] sm:$0xf]
          %v553 = vld [vmem:[#allocation5 + $0x1ac] sm:$0xf]
          %v554 = vld [vmem:[#allocation5 + $0x1b0] sm:$0xf]
          %v555 = vld [vmem:[#allocation5 + $0x1b4] sm:$0xf]
          %v556 = vld [vmem:[#allocation5 + $0x1b8] sm:$0xf]
          %v557 = vld [vmem:[#allocation5 + $0x1bc] sm:$0xf]
          %v558 = vld [vmem:[#allocation5 + $0x1c0] sm:$0xf]
          %v559 = vld [vmem:[#allocation5 + $0x1c4] sm:$0xf]
          %v560 = vld [vmem:[#allocation5 + $0x1c8] sm:$0xf]
          %v561 = vld [vmem:[#allocation5 + $0x1cc] sm:$0xf]
          %v562 = vld [vmem:[#allocation5 + $0x1d0] sm:$0xf]
          %v563 = vld [vmem:[#allocation5 + $0x1d4] sm:$0xf]
          %v564 = vld [vmem:[#allocation5 + $0x1d8] sm:$0xf]
          %v565 = vld [vmem:[#allocation5 + $0x1dc] sm:$0xf]
          %v566 = vld [vmem:[#allocation5 + $0x1e0] sm:$0xf]
          %v567 = vld [vmem:[#allocation5 + $0x1e4] sm:$0xf]
          %v568 = vld [vmem:[#allocation5 + $0x1e8] sm:$0xf]
          %v569 = vld [vmem:[#allocation5 + $0x1ec] sm:$0xf]
          %v570 = vld [vmem:[#allocation5 + $0x1f0] sm:$0xf]
          %v571 = vld [vmem:[#allocation5 + $0x1f4] sm:$0xf]
          %v572 = vld [vmem:[#allocation5 + $0x1f8] sm:$0xf]
          %v573 = vld [vmem:[#allocation5 + $0x1fc] sm:$0xf]
          %v574 = vld [vmem:[#allocation5 + $0x200] sm:$0xf]
          %v575 = vld [vmem:[#allocation5 + $0x204] sm:$0xf]
          %v576 = vld [vmem:[#allocation5 + $0x208] sm:$0xf]
          %v577 = vld [vmem:[#allocation5 + $0x20c] sm:$0xf]
          %v578 = vld [vmem:[#allocation5 + $0x210] sm:$0xf]
          %v579 = vld [vmem:[#allocation5 + $0x214] sm:$0xf]
          %v580 = vld [vmem:[#allocation5 + $0x218] sm:$0xf]
          %v581 = vld [vmem:[#allocation5 + $0x21c] sm:$0xf]
          %v582 = vld [vmem:[#allocation5 + $0x220] sm:$0xf]
          %v583 = vld [vmem:[#allocation5 + $0x224] sm:$0xf]
          %v584 = vld [vmem:[#allocation5 + $0x228] sm:$0xf]
          %v585 = vld [vmem:[#allocation5 + $0x22c] sm:$0xf]
          %v586 = vld [vmem:[#allocation5 + $0x230] sm:$0xf]
          %v587 = vld [vmem:[#allocation5 + $0x234] sm:$0xf]
          %v588 = vld [vmem:[#allocation5 + $0x238] sm:$0xf]
          %v589 = vld [vmem:[#allocation5 + $0x23c] sm:$0xf]
          %v590 = vld [vmem:[#allocation5 + $0x240] sm:$0xf]
          %v591 = vld [vmem:[#allocation5 + $0x244] sm:$0xf]
          %v592 = vld [vmem:[#allocation5 + $0x248] sm:$0xf]
          %v593 = vld [vmem:[#allocation5 + $0x24c] sm:$0xf]
          %v594 = vld [vmem:[#allocation5 + $0x250] sm:$0xf]
          %v595 = vld [vmem:[#allocation5 + $0x254] sm:$0xf]
          %v596 = vld [vmem:[#allocation5 + $0x258] sm:$0xf]
          %v597 = vld [vmem:[#allocation5 + $0x25c] sm:$0xf]
          %v598 = vld [vmem:[#allocation5 + $0x260] sm:$0xf]
          %v599 = vld [vmem:[#allocation5 + $0x264] sm:$0xf]
          %v600 = vld [vmem:[#allocation5 + $0x268] sm:$0xf]
          %v601 = vld [vmem:[#allocation5 + $0x26c] sm:$0xf]
          %v602 = vld [vmem:[#allocation5 + $0x270] sm:$0xf]
          %v603 = vld [vmem:[#allocation5 + $0x274] sm:$0xf]
          %v604 = vld [vmem:[#allocation5 + $0x278] sm:$0xf]
          %v605 = vld [vmem:[#allocation5 + $0x27c] sm:$0xf]
          %v606 = vld [vmem:[#allocation5 + $0x280] sm:$0xf]
          %v607 = vld [vmem:[#allocation5 + $0x284] sm:$0xf]
          %v608 = vld [vmem:[#allocation5 + $0x288] sm:$0xf]
          %v609 = vld [vmem:[#allocation5 + $0x28c] sm:$0xf]
          %v610 = vld [vmem:[#allocation5 + $0x290] sm:$0xf]
          %v611 = vld [vmem:[#allocation5 + $0x294] sm:$0xf]
          %v612 = vld [vmem:[#allocation5 + $0x298] sm:$0xf]
          %v613 = vld [vmem:[#allocation5 + $0x29c] sm:$0xf]
          %v614 = vld [vmem:[#allocation5 + $0x2a0] sm:$0xf]
          %v615 = vld [vmem:[#allocation5 + $0x2a4] sm:$0xf]
          %v616 = vld [vmem:[#allocation5 + $0x2a8] sm:$0xf]
          %v617 = vld [vmem:[#allocation5 + $0x2ac] sm:$0xf]
          %v618 = vld [vmem:[#allocation5 + $0x2b0] sm:$0xf]
          %v619 = vld [vmem:[#allocation5 + $0x2b4] sm:$0xf]
          %v620 = vld [vmem:[#allocation5 + $0x2b8] sm:$0xf]
          %v621 = vld [vmem:[#allocation5 + $0x2bc] sm:$0xf]
          %v622 = vld [vmem:[#allocation5 + $0x2c0] sm:$0xf]
          %v623 = vld [vmem:[#allocation5 + $0x2c4] sm:$0xf]
          %v624 = vld [vmem:[#allocation5 + $0x2c8] sm:$0xf]
          %v625 = vld [vmem:[#allocation5 + $0x2cc] sm:$0xf]
          %v626 = vld [vmem:[#allocation5 + $0x2d0] sm:$0xf]
          %v627 = vld [vmem:[#allocation5 + $0x2d4] sm:$0xf]
          %v628 = vld [vmem:[#allocation5 + $0x2d8] sm:$0xf]
          %v629 = vld [vmem:[#allocation5 + $0x2dc] sm:$0xf]
          %v630 = vld [vmem:[#allocation5 + $0x2e0] sm:$0xf]
          %v631 = vld [vmem:[#allocation5 + $0x2e4] sm:$0xf]
          %v632 = vld [vmem:[#allocation5 + $0x2e8] sm:$0xf]
          %v633 = vld [vmem:[#allocation5 + $0x2ec] sm:$0xf]
          %v634 = vld [vmem:[#allocation5 + $0x2f0] sm:$0xf]
          %v635 = vld [vmem:[#allocation5 + $0x2f4] sm:$0xf]
          %v636 = vld [vmem:[#allocation5 + $0x2f8] sm:$0xf]
          %v637 = vld [vmem:[#allocation5 + $0x2fc] sm:$0xf]
          %v638 = vld [vmem:[#allocation5 + $0x300] sm:$0xf]
          %v639 = vld [vmem:[#allocation5 + $0x304] sm:$0xf]
          %v640 = vld [vmem:[#allocation5 + $0x308] sm:$0xf]
          %v641 = vld [vmem:[#allocation5 + $0x30c] sm:$0xf]
          %v642 = vld [vmem:[#allocation5 + $0x310] sm:$0xf]
          %v643 = vld [vmem:[#allocation5 + $0x314] sm:$0xf]
          %v644 = vld [vmem:[#allocation5 + $0x318] sm:$0xf]
          %v645 = vld [vmem:[#allocation5 + $0x31c] sm:$0xf]
          %v646 = vld [vmem:[#allocation5 + $0x320] sm:$0xf]
          %v647 = vld [vmem:[#allocation5 + $0x324] sm:$0xf]
          %v648 = vld [vmem:[#allocation5 + $0x328] sm:$0xf]
          %v649 = vld [vmem:[#allocation5 + $0x32c] sm:$0xf]
          %v650 = vld [vmem:[#allocation5 + $0x330] sm:$0xf]
          %v651 = vld [vmem:[#allocation5 + $0x334] sm:$0xf]
          %v652 = vld [vmem:[#allocation5 + $0x338] sm:$0xf]
          %v653 = vld [vmem:[#allocation5 + $0x33c] sm:$0xf]
          %v654 = vld [vmem:[#allocation5 + $0x340] sm:$0xf]
          %v655 = vld [vmem:[#allocation5 + $0x344] sm:$0xf]
          %v656 = vld [vmem:[#allocation5 + $0x348] sm:$0xf]
          %v657 = vld [vmem:[#allocation5 + $0x34c] sm:$0xf]
          %v658 = vld [vmem:[#allocation5 + $0x350] sm:$0xf]
          %v659 = vld [vmem:[#allocation5 + $0x354] sm:$0xf]
          %v660 = vld [vmem:[#allocation5 + $0x358] sm:$0xf]
          %v661 = vld [vmem:[#allocation5 + $0x35c] sm:$0xf]
          %v662 = vld [vmem:[#allocation5 + $0x360] sm:$0xf]
          %v663 = vld [vmem:[#allocation5 + $0x364] sm:$0xf]
          %v664 = vld [vmem:[#allocation5 + $0x368] sm:$0xf]
          %v665 = vld [vmem:[#allocation5 + $0x36c] sm:$0xf]
          %v666 = vld [vmem:[#allocation5 + $0x370] sm:$0xf]
          %v667 = vld [vmem:[#allocation5 + $0x374] sm:$0xf]
          %v668 = vld [vmem:[#allocation5 + $0x378] sm:$0xf]
          %v669 = vld [vmem:[#allocation5 + $0x37c] sm:$0xf]
          %v670 = vld [vmem:[#allocation5 + $0x380] sm:$0xf]
          %v671 = vld [vmem:[#allocation5 + $0x384] sm:$0xf]
          %v672 = vld [vmem:[#allocation5 + $0x388] sm:$0xf]
          %v673 = vld [vmem:[#allocation5 + $0x38c] sm:$0xf]
          %v674 = vld [vmem:[#allocation5 + $0x390] sm:$0xf]
          %v675 = vld [vmem:[#allocation5 + $0x394] sm:$0xf]
          %v676 = vld [vmem:[#allocation5 + $0x398] sm:$0xf]
          %v677 = vld [vmem:[#allocation5 + $0x39c] sm:$0xf]
          %v678 = vld [vmem:[#allocation5 + $0x3a0] sm:$0xf]
          %v679 = vld [vmem:[#allocation5 + $0x3a4] sm:$0xf]
          %v680 = vld [vmem:[#allocation5 + $0x3a8] sm:$0xf]
          %v681 = vld [vmem:[#allocation5 + $0x3ac] sm:$0xf]
          %v682 = vld [vmem:[#allocation5 + $0x3b0] sm:$0xf]
          %v683 = vld [vmem:[#allocation5 + $0x3b4] sm:$0xf]
          %v684 = vld [vmem:[#allocation5 + $0x3b8] sm:$0xf]
          %v685 = vld [vmem:[#allocation5 + $0x3bc] sm:$0xf]
          %v686 = vld [vmem:[#allocation5 + $0x3c0] sm:$0xf]
          %v687 = vld [vmem:[#allocation5 + $0x3c4] sm:$0xf]
          %v688 = vld [vmem:[#allocation5 + $0x3c8] sm:$0xf]
          %v689 = vld [vmem:[#allocation5 + $0x3cc] sm:$0xf]
          %v690 = vld [vmem:[#allocation5 + $0x3d0] sm:$0xf]
          %v691 = vld [vmem:[#allocation5 + $0x3d4] sm:$0xf]
          %v692 = vld [vmem:[#allocation5 + $0x3d8] sm:$0xf]
          %v693 = vld [vmem:[#allocation5 + $0x3dc] sm:$0xf]
          %v694 = vld [vmem:[#allocation5 + $0x3e0] sm:$0xf]
          %v695 = vld [vmem:[#allocation5 + $0x3e4] sm:$0xf]
          %v696 = vld [vmem:[#allocation5 + $0x3e8] sm:$0xf]
          %v697 = vld [vmem:[#allocation5 + $0x3ec] sm:$0xf]
          %v698 = vld [vmem:[#allocation5 + $0x3f0] sm:$0xf]
          %v699 = vld [vmem:[#allocation5 + $0x3f4] sm:$0xf]
          %v700 = vld [vmem:[#allocation5 + $0x3f8] sm:$0xf]
          %v701 = vld [vmem:[#allocation5 + $0x3fc] sm:$0xf]
          %v702 = vld [vmem:[#allocation5 + $0x400] sm:$0xf]
          %v703 = vld [vmem:[#allocation5 + $0x404] sm:$0xf]
          %v704 = vld [vmem:[#allocation5 + $0x408] sm:$0xf]
          %v705 = vld [vmem:[#allocation5 + $0x40c] sm:$0xf]
          %v706 = vld [vmem:[#allocation5 + $0x410] sm:$0xf]
          %v707 = vld [vmem:[#allocation5 + $0x414] sm:$0xf]
          %v708 = vld [vmem:[#allocation5 + $0x418] sm:$0xf]
          %v709 = vld [vmem:[#allocation5 + $0x41c] sm:$0xf]
          %v710 = vld [vmem:[#allocation5 + $0x420] sm:$0xf]
          %v711 = vld [vmem:[#allocation5 + $0x424] sm:$0xf]
          %v712 = vld [vmem:[#allocation5 + $0x428] sm:$0xf]
          %v713 = vld [vmem:[#allocation5 + $0x42c] sm:$0xf]
          %v714 = vld [vmem:[#allocation5 + $0x430] sm:$0xf]
          %v715 = vld [vmem:[#allocation5 + $0x434] sm:$0xf]
          %v716 = vld [vmem:[#allocation5 + $0x438] sm:$0xf]
          %v717 = vld [vmem:[#allocation5 + $0x43c] sm:$0xf]
          %v718 = vld [vmem:[#allocation5 + $0x440] sm:$0xf]
          %v719 = vld [vmem:[#allocation5 + $0x444] sm:$0xf]
          %v720 = vld [vmem:[#allocation5 + $0x448] sm:$0xf]
          %v721 = vld [vmem:[#allocation5 + $0x44c] sm:$0xf]
          %v722 = vld [vmem:[#allocation5 + $0x450] sm:$0xf]
          %v723 = vld [vmem:[#allocation5 + $0x454] sm:$0xf]
          %v724 = vld [vmem:[#allocation5 + $0x458] sm:$0xf]
          %v725 = vld [vmem:[#allocation5 + $0x45c] sm:$0xf]
          %v726 = vld [vmem:[#allocation5 + $0x460] sm:$0xf]
          %v727 = vld [vmem:[#allocation5 + $0x464] sm:$0xf]
          %v728 = vld [vmem:[#allocation5 + $0x468] sm:$0xf]
          %v729 = vld [vmem:[#allocation5 + $0x46c] sm:$0xf]
          %v730 = vld [vmem:[#allocation5 + $0x470] sm:$0xf]
          %v731 = vld [vmem:[#allocation5 + $0x474] sm:$0xf]
          %v732 = vld [vmem:[#allocation5 + $0x478] sm:$0xf]
          %v733 = vld [vmem:[#allocation5 + $0x47c] sm:$0xf]
          %v734 = vld [vmem:[#allocation5 + $0x480] sm:$0xf]
          %v735 = vld [vmem:[#allocation5 + $0x484] sm:$0xf]
          %v736 = vld [vmem:[#allocation5 + $0x488] sm:$0xf]
          %v737 = vld [vmem:[#allocation5 + $0x48c] sm:$0xf]
          %v738 = vld [vmem:[#allocation5 + $0x490] sm:$0xf]
          %v739 = vld [vmem:[#allocation5 + $0x494] sm:$0xf]
          %v740 = vld [vmem:[#allocation5 + $0x498] sm:$0xf]
          %v741 = vld [vmem:[#allocation5 + $0x49c] sm:$0xf]
          %v742 = vld [vmem:[#allocation5 + $0x4a0] sm:$0xf]
          %v743 = vld [vmem:[#allocation5 + $0x4a4] sm:$0xf]
          %v744 = vld [vmem:[#allocation5 + $0x4a8] sm:$0xf]
          %v745 = vld [vmem:[#allocation5 + $0x4ac] sm:$0xf]
          %v746 = vld [vmem:[#allocation5 + $0x4b0] sm:$0xf]
          %v747 = vld [vmem:[#allocation5 + $0x4b4] sm:$0xf]
          %v748 = vld [vmem:[#allocation5 + $0x4b8] sm:$0xf]
          %v749 = vld [vmem:[#allocation5 + $0x4bc] sm:$0xf]
          %v750 = vld [vmem:[#allocation5 + $0x4c0] sm:$0xf]
          %v751 = vld [vmem:[#allocation5 + $0x4c4] sm:$0xf]
          %v752 = vld [vmem:[#allocation5 + $0x4c8] sm:$0xf]
          %v753 = vld [vmem:[#allocation5 + $0x4cc] sm:$0xf]
          %v754 = vld [vmem:[#allocation5 + $0x4d0] sm:$0xf]
          %v755 = vld [vmem:[#allocation5 + $0x4d4] sm:$0xf]
          %v756 = vld [vmem:[#allocation5 + $0x4d8] sm:$0xf]
          %v757 = vld [vmem:[#allocation5 + $0x4dc] sm:$0xf]
          %v758 = vld [vmem:[#allocation5 + $0x4e0] sm:$0xf]
          %v759 = vld [vmem:[#allocation5 + $0x4e4] sm:$0xf]
          %v760 = vld [vmem:[#allocation5 + $0x4e8] sm:$0xf]
          %v761 = vld [vmem:[#allocation5 + $0x4ec] sm:$0xf]
          %v762 = vld [vmem:[#allocation5 + $0x4f0] sm:$0xf]
          %v763 = vld [vmem:[#allocation5 + $0x4f4] sm:$0xf]
          %v764 = vld [vmem:[#allocation5 + $0x4f8] sm:$0xf]
          %v765 = vld [vmem:[#allocation5 + $0x4fc] sm:$0xf]
          %v766 = vld [vmem:[#allocation5 + $0x500] sm:$0xf]
          %v767 = vld [vmem:[#allocation5 + $0x504] sm:$0xf]
          %v768 = vld [vmem:[#allocation5 + $0x508] sm:$0xf]
          %v769 = vld [vmem:[#allocation5 + $0x50c] sm:$0xf]
          %v770 = vld [vmem:[#allocation5 + $0x510] sm:$0xf]
          %v771 = vld [vmem:[#allocation5 + $0x514] sm:$0xf]
          %v772 = vld [vmem:[#allocation5 + $0x518] sm:$0xf]
          %v773 = vld [vmem:[#allocation5 + $0x51c] sm:$0xf]
          %v774 = vld [vmem:[#allocation5 + $0x520] sm:$0xf]
          %v775 = vld [vmem:[#allocation5 + $0x524] sm:$0xf]
          %v776 = vld [vmem:[#allocation7] sm:$0x1]
          %v778 = vperm.slane %v776, 0
          %v1110 = vunpack.c.l.b16 %v446
          %v1111 = vunpack.c.l.b16 %v447
          %v1112 = vunpack.c.l.b16 %v448
          %v1113 = vunpack.c.l.b16 %v449
          %v1114 = vunpack.c.l.b16 %v450
          %v1115 = vunpack.c.l.b16 %v451
          %v1116 = vunpack.c.l.b16 %v452
          %v1117 = vunpack.c.l.b16 %v453
          %v1118 = vunpack.c.l.b16 %v454
          %v1119 = vunpack.c.l.b16 %v455
          %v1120 = vunpack.c.l.b16 %v456
          %v1121 = vunpack.c.l.b16 %v457
          %v1122 = vunpack.c.l.b16 %v458
          %v1123 = vunpack.c.l.b16 %v459
          %v1124 = vunpack.c.l.b16 %v460
          %v1125 = vunpack.c.l.b16 %v461
          %v1126 = vunpack.c.l.b16 %v462
          %v1127 = vunpack.c.l.b16 %v463
          %v1128 = vunpack.c.l.b16 %v464
          %v1129 = vunpack.c.l.b16 %v465
          %v1130 = vunpack.c.l.b16 %v466
          %v1131 = vunpack.c.l.b16 %v467
          %v1132 = vunpack.c.l.b16 %v468
          %v1133 = vunpack.c.l.b16 %v469
          %v1134 = vunpack.c.l.b16 %v470
          %v1135 = vunpack.c.l.b16 %v471
          %v1136 = vunpack.c.l.b16 %v472
          %v1137 = vunpack.c.l.b16 %v473
          %v1138 = vunpack.c.l.b16 %v474
          %v1139 = vunpack.c.l.b16 %v475
          %v1140 = vunpack.c.l.b16 %v476
          %v1141 = vunpack.c.l.b16 %v477
          %v1142 = vunpack.c.l.b16 %v478
          %v1143 = vunpack.c.l.b16 %v479
          %v1144 = vunpack.c.l.b16 %v480
          %v1145 = vunpack.c.l.b16 %v481
          %v1146 = vunpack.c.l.b16 %v482
          %v1147 = vunpack.c.l.b16 %v483
          %v1148 = vunpack.c.l.b16 %v484
          %v1149 = vunpack.c.l.b16 %v485
          %v1150 = vunpack.c.l.b16 %v486
          %v1151 = vunpack.c.l.b16 %v487
          %v1152 = vunpack.c.l.b16 %v488
          %v1153 = vunpack.c.l.b16 %v489
          %v1154 = vunpack.c.l.b16 %v490
          %v1155 = vunpack.c.l.b16 %v491
          %v1156 = vunpack.c.l.b16 %v492
          %v1157 = vunpack.c.l.b16 %v493
          %v1158 = vunpack.c.l.b16 %v494
          %v1159 = vunpack.c.l.b16 %v495
          %v1160 = vunpack.c.l.b16 %v496
          %v1161 = vunpack.c.l.b16 %v497
          %v1162 = vunpack.c.l.b16 %v498
          %v1163 = vunpack.c.l.b16 %v499
          %v1164 = vunpack.c.l.b16 %v500
          %v1165 = vunpack.c.l.b16 %v501
          %v1166 = vunpack.c.l.b16 %v502
          %v1167 = vunpack.c.l.b16 %v503
          %v1168 = vunpack.c.l.b16 %v504
          %v1169 = vunpack.c.l.b16 %v505
          %v1170 = vunpack.c.l.b16 %v506
          %v1171 = vunpack.c.l.b16 %v507
          %v1172 = vunpack.c.l.b16 %v508
          %v1173 = vunpack.c.l.b16 %v509
          %v1174 = vunpack.c.l.b16 %v510
          %v1175 = vunpack.c.l.b16 %v511
          %v1176 = vunpack.c.l.b16 %v512
          %v1177 = vunpack.c.l.b16 %v513
          %v1178 = vunpack.c.l.b16 %v514
          %v1179 = vunpack.c.l.b16 %v515
          %v1180 = vunpack.c.l.b16 %v516
          %v1181 = vunpack.c.l.b16 %v517
          %v1182 = vunpack.c.l.b16 %v518
          %v1183 = vunpack.c.l.b16 %v519
          %v1184 = vunpack.c.l.b16 %v520
          %v1185 = vunpack.c.l.b16 %v521
          %v1186 = vunpack.c.l.b16 %v522
          %v1187 = vunpack.c.l.b16 %v523
          %v1188 = vunpack.c.l.b16 %v524
          %v1189 = vunpack.c.l.b16 %v525
          %v1190 = vunpack.c.l.b16 %v526
          %v1191 = vunpack.c.l.b16 %v527
          %v1192 = vunpack.c.l.b16 %v528
          %v1193 = vunpack.c.l.b16 %v529
          %v1194 = vunpack.c.l.b16 %v530
          %v1195 = vunpack.c.l.b16 %v531
          %v1196 = vunpack.c.l.b16 %v532
          %v1197 = vunpack.c.l.b16 %v533
          %v1198 = vunpack.c.l.b16 %v534
          %v1199 = vunpack.c.l.b16 %v535
          %v1200 = vunpack.c.l.b16 %v536
          %v1201 = vunpack.c.l.b16 %v537
          %v1202 = vunpack.c.l.b16 %v538
          %v1203 = vunpack.c.l.b16 %v539
          %v1204 = vunpack.c.l.b16 %v540
          %v1205 = vunpack.c.l.b16 %v541
          %v1206 = vunpack.c.l.b16 %v542
          %v1207 = vunpack.c.l.b16 %v543
          %v1208 = vunpack.c.l.b16 %v544
          %v1209 = vunpack.c.l.b16 %v545
          %v1210 = vunpack.c.l.b16 %v546
          %v1211 = vunpack.c.l.b16 %v547
          %v1212 = vunpack.c.l.b16 %v548
          %v1213 = vunpack.c.l.b16 %v549
          %v1214 = vunpack.c.l.b16 %v550
          %v1215 = vunpack.c.l.b16 %v551
          %v1216 = vunpack.c.l.b16 %v552
          %v1217 = vunpack.c.l.b16 %v553
          %v1218 = vunpack.c.l.b16 %v554
          %v1219 = vunpack.c.l.b16 %v555
          %v1220 = vunpack.c.l.b16 %v556
          %v1221 = vunpack.c.l.b16 %v557
          %v1222 = vunpack.c.l.b16 %v558
          %v1223 = vunpack.c.l.b16 %v559
          %v1224 = vunpack.c.l.b16 %v560
          %v1225 = vunpack.c.l.b16 %v561
          %v1226 = vunpack.c.l.b16 %v562
          %v1227 = vunpack.c.l.b16 %v563
          %v1228 = vunpack.c.l.b16 %v564
          %v1229 = vunpack.c.l.b16 %v565
          %v1230 = vunpack.c.l.b16 %v566
          %v1231 = vunpack.c.l.b16 %v567
          %v1232 = vunpack.c.l.b16 %v568
          %v1233 = vunpack.c.l.b16 %v569
          %v1234 = vunpack.c.l.b16 %v570
          %v1235 = vunpack.c.l.b16 %v571
          %v1236 = vunpack.c.l.b16 %v572
          %v1237 = vunpack.c.l.b16 %v573
          %v1238 = vunpack.c.l.b16 %v574
          %v1239 = vunpack.c.l.b16 %v575
          %v1240 = vunpack.c.l.b16 %v576
          %v1241 = vunpack.c.l.b16 %v577
          %v1242 = vunpack.c.l.b16 %v578
          %v1243 = vunpack.c.l.b16 %v579
          %v1244 = vunpack.c.l.b16 %v580
          %v1245 = vunpack.c.l.b16 %v581
          %v1246 = vunpack.c.l.b16 %v582
          %v1247 = vunpack.c.l.b16 %v583
          %v1248 = vunpack.c.l.b16 %v584
          %v1249 = vunpack.c.l.b16 %v585
          %v1250 = vunpack.c.l.b16 %v586
          %v1251 = vunpack.c.l.b16 %v587
          %v1252 = vunpack.c.l.b16 %v588
          %v1253 = vunpack.c.l.b16 %v589
          %v1254 = vunpack.c.l.b16 %v590
          %v1255 = vunpack.c.l.b16 %v591
          %v1256 = vunpack.c.l.b16 %v592
          %v1257 = vunpack.c.l.b16 %v593
          %v1258 = vunpack.c.l.b16 %v594
          %v1259 = vunpack.c.l.b16 %v595
          %v1260 = vunpack.c.l.b16 %v596
          %v1261 = vunpack.c.l.b16 %v597
          %v1262 = vunpack.c.l.b16 %v598
          %v1263 = vunpack.c.l.b16 %v599
          %v1264 = vunpack.c.l.b16 %v600
          %v1265 = vunpack.c.l.b16 %v601
          %v1266 = vunpack.c.l.b16 %v602
          %v1267 = vunpack.c.l.b16 %v603
          %v1268 = vunpack.c.l.b16 %v604
          %v1269 = vunpack.c.l.b16 %v605
          %v1270 = vunpack.c.l.b16 %v606
          %v1271 = vunpack.c.l.b16 %v607
          %v1272 = vunpack.c.l.b16 %v608
          %v1273 = vunpack.c.l.b16 %v609
          %v1274 = vunpack.c.l.b16 %v610
          %v1275 = vunpack.c.l.b16 %v611
          %v1276 = vunpack.c.l.b16 %v612
          %v1277 = vunpack.c.l.b16 %v613
          %v1278 = vunpack.c.l.b16 %v614
          %v1279 = vunpack.c.l.b16 %v615
          %v1280 = vunpack.c.l.b16 %v616
          %v1281 = vunpack.c.l.b16 %v617
          %v1282 = vunpack.c.l.b16 %v618
          %v1283 = vunpack.c.l.b16 %v619
          %v1284 = vunpack.c.l.b16 %v620
          %v1285 = vunpack.c.l.b16 %v621
          %v1286 = vunpack.c.l.b16 %v622
          %v1287 = vunpack.c.l.b16 %v623
          %v1288 = vunpack.c.l.b16 %v624
          %v1289 = vunpack.c.l.b16 %v625
          %v1290 = vunpack.c.l.b16 %v626
          %v1291 = vunpack.c.l.b16 %v627
          %v1292 = vunpack.c.l.b16 %v628
          %v1293 = vunpack.c.l.b16 %v629
          %v1294 = vunpack.c.l.b16 %v630
          %v1295 = vunpack.c.l.b16 %v631
          %v1296 = vunpack.c.l.b16 %v632
          %v1297 = vunpack.c.l.b16 %v633
          %v1298 = vunpack.c.l.b16 %v634
          %v1299 = vunpack.c.l.b16 %v635
          %v1300 = vunpack.c.l.b16 %v636
          %v1301 = vunpack.c.l.b16 %v637
          %v1302 = vunpack.c.l.b16 %v638
          %v1303 = vunpack.c.l.b16 %v639
          %v1304 = vunpack.c.l.b16 %v640
          %v1305 = vunpack.c.l.b16 %v641
          %v1306 = vunpack.c.l.b16 %v642
          %v1307 = vunpack.c.l.b16 %v643
          %v1308 = vunpack.c.l.b16 %v644
          %v1309 = vunpack.c.l.b16 %v645
          %v1310 = vunpack.c.l.b16 %v646
          %v1311 = vunpack.c.l.b16 %v647
          %v1312 = vunpack.c.l.b16 %v648
          %v1313 = vunpack.c.l.b16 %v649
          %v1314 = vunpack.c.l.b16 %v650
          %v1315 = vunpack.c.l.b16 %v651
          %v1316 = vunpack.c.l.b16 %v652
          %v1317 = vunpack.c.l.b16 %v653
          %v1318 = vunpack.c.l.b16 %v654
          %v1319 = vunpack.c.l.b16 %v655
          %v1320 = vunpack.c.l.b16 %v656
          %v1321 = vunpack.c.l.b16 %v657
          %v1322 = vunpack.c.l.b16 %v658
          %v1323 = vunpack.c.l.b16 %v659
          %v1324 = vunpack.c.l.b16 %v660
          %v1325 = vunpack.c.l.b16 %v661
          %v1326 = vunpack.c.l.b16 %v662
          %v1327 = vunpack.c.l.b16 %v663
          %v1328 = vunpack.c.l.b16 %v664
          %v1329 = vunpack.c.l.b16 %v665
          %v1330 = vunpack.c.l.b16 %v666
          %v1331 = vunpack.c.l.b16 %v667
          %v1332 = vunpack.c.l.b16 %v668
          %v1333 = vunpack.c.l.b16 %v669
          %v1334 = vunpack.c.l.b16 %v670
          %v1335 = vunpack.c.l.b16 %v671
          %v1336 = vunpack.c.l.b16 %v672
          %v1337 = vunpack.c.l.b16 %v673
          %v1338 = vunpack.c.l.b16 %v674
          %v1339 = vunpack.c.l.b16 %v675
          %v1340 = vunpack.c.l.b16 %v676
          %v1341 = vunpack.c.l.b16 %v677
          %v1342 = vunpack.c.l.b16 %v678
          %v1343 = vunpack.c.l.b16 %v679
          %v1344 = vunpack.c.l.b16 %v680
          %v1345 = vunpack.c.l.b16 %v681
          %v1346 = vunpack.c.l.b16 %v682
          %v1347 = vunpack.c.l.b16 %v683
          %v1348 = vunpack.c.l.b16 %v684
          %v1349 = vunpack.c.l.b16 %v685
          %v1350 = vunpack.c.l.b16 %v686
          %v1351 = vunpack.c.l.b16 %v687
          %v1352 = vunpack.c.l.b16 %v688
          %v1353 = vunpack.c.l.b16 %v689
          %v1354 = vunpack.c.l.b16 %v690
          %v1355 = vunpack.c.l.b16 %v691
          %v1356 = vunpack.c.l.b16 %v692
          %v1357 = vunpack.c.l.b16 %v693
          %v1358 = vunpack.c.l.b16 %v694
          %v1359 = vunpack.c.l.b16 %v695
          %v1360 = vunpack.c.l.b16 %v696
          %v1361 = vunpack.c.l.b16 %v697
          %v1362 = vunpack.c.l.b16 %v698
          %v1363 = vunpack.c.l.b16 %v699
          %v1364 = vunpack.c.l.b16 %v700
          %v1365 = vunpack.c.l.b16 %v701
          %v1366 = vunpack.c.l.b16 %v702
          %v1367 = vunpack.c.l.b16 %v703
          %v1368 = vunpack.c.l.b16 %v704
          %v1369 = vunpack.c.l.b16 %v705
          %v1370 = vunpack.c.l.b16 %v706
          %v1371 = vunpack.c.l.b16 %v707
          %v1372 = vunpack.c.l.b16 %v708
          %v1373 = vunpack.c.l.b16 %v709
          %v1374 = vunpack.c.l.b16 %v710
          %v1375 = vunpack.c.l.b16 %v711
          %v1376 = vunpack.c.l.b16 %v712
          %v1377 = vunpack.c.l.b16 %v713
          %v1378 = vunpack.c.l.b16 %v714
          %v1379 = vunpack.c.l.b16 %v715
          %v1380 = vunpack.c.l.b16 %v716
          %v1381 = vunpack.c.l.b16 %v717
          %v1382 = vunpack.c.l.b16 %v718
          %v1383 = vunpack.c.l.b16 %v719
          %v1384 = vunpack.c.l.b16 %v720
          %v1385 = vunpack.c.l.b16 %v721
          %v1386 = vunpack.c.l.b16 %v722
          %v1387 = vunpack.c.l.b16 %v723
          %v1388 = vunpack.c.l.b16 %v724
          %v1389 = vunpack.c.l.b16 %v725
          %v1390 = vunpack.c.l.b16 %v726
          %v1391 = vunpack.c.l.b16 %v727
          %v1392 = vunpack.c.l.b16 %v728
          %v1393 = vunpack.c.l.b16 %v729
          %v1394 = vunpack.c.l.b16 %v730
          %v1395 = vunpack.c.l.b16 %v731
          %v1396 = vunpack.c.l.b16 %v732
          %v1397 = vunpack.c.l.b16 %v733
          %v1398 = vunpack.c.l.b16 %v734
          %v1399 = vunpack.c.l.b16 %v735
          %v1400 = vunpack.c.l.b16 %v736
          %v1401 = vunpack.c.l.b16 %v737
          %v1402 = vunpack.c.l.b16 %v738
          %v1403 = vunpack.c.l.b16 %v739
          %v1404 = vunpack.c.l.b16 %v740
          %v1405 = vunpack.c.l.b16 %v741
          %v1406 = vunpack.c.l.b16 %v742
          %v1407 = vunpack.c.l.b16 %v743
          %v1408 = vunpack.c.l.b16 %v744
          %v1409 = vunpack.c.l.b16 %v745
          %v1410 = vunpack.c.l.b16 %v746
          %v1411 = vunpack.c.l.b16 %v747
          %v1412 = vunpack.c.l.b16 %v748
          %v1413 = vunpack.c.l.b16 %v749
          %v1414 = vunpack.c.l.b16 %v750
          %v1415 = vunpack.c.l.b16 %v751
          %v1416 = vunpack.c.l.b16 %v752
          %v1417 = vunpack.c.l.b16 %v753
          %v1418 = vunpack.c.l.b16 %v754
          %v1419 = vunpack.c.l.b16 %v755
          %v1420 = vunpack.c.l.b16 %v756
          %v1421 = vunpack.c.l.b16 %v757
          %v1422 = vunpack.c.l.b16 %v758
          %v1423 = vunpack.c.l.b16 %v759
          %v1424 = vunpack.c.l.b16 %v760
          %v1425 = vunpack.c.l.b16 %v761
          %v1426 = vunpack.c.l.b16 %v762
          %v1427 = vunpack.c.l.b16 %v763
          %v1428 = vunpack.c.l.b16 %v764
          %v1429 = vunpack.c.l.b16 %v765
          %v1430 = vunpack.c.l.b16 %v766
          %v1431 = vunpack.c.l.b16 %v767
          %v1432 = vunpack.c.l.b16 %v768
          %v1433 = vunpack.c.l.b16 %v769
          %v1434 = vunpack.c.l.b16 %v770
          %v1435 = vunpack.c.l.b16 %v771
          %v1436 = vunpack.c.l.b16 %v772
          %v1437 = vunpack.c.l.b16 %v773
          %v1438 = vunpack.c.l.b16 %v774
          %v1439 = vunpack.c.l.b16 %v775
          %v1440 = vpack.c.b16 %v1111, %v1110
          %v1441 = vpack.c.b16 %v1113, %v1112
          %v1442 = vpack.c.b16 %v1115, %v1114
          %v1443 = vpack.c.b16 %v1117, %v1116
          %v1444 = vpack.c.b16 %v1119, %v1118
          %v1445 = vpack.c.b16 %v1121, %v1120
          %v1446 = vpack.c.b16 %v1123, %v1122
          %v1447 = vpack.c.b16 %v1125, %v1124
          %v1448 = vpack.c.b16 %v1127, %v1126
          %v1449 = vpack.c.b16 %v1129, %v1128
          %v1450 = vpack.c.b16 %v1131, %v1130
          %v1451 = vpack.c.b16 %v1133, %v1132
          %v1452 = vpack.c.b16 %v1135, %v1134
          %v1453 = vpack.c.b16 %v1137, %v1136
          %v1454 = vpack.c.b16 %v1139, %v1138
          %v1455 = vpack.c.b16 %v1141, %v1140
          %v1456 = vpack.c.b16 %v1143, %v1142
          %v1457 = vpack.c.b16 %v1145, %v1144
          %v1458 = vpack.c.b16 %v1147, %v1146
          %v1459 = vpack.c.b16 %v1149, %v1148
          %v1460 = vpack.c.b16 %v1151, %v1150
          %v1461 = vpack.c.b16 %v1153, %v1152
          %v1462 = vpack.c.b16 %v1155, %v1154
          %v1463 = vpack.c.b16 %v1157, %v1156
          %v1464 = vpack.c.b16 %v1159, %v1158
          %v1465 = vpack.c.b16 %v1161, %v1160
          %v1466 = vpack.c.b16 %v1163, %v1162
          %v1467 = vpack.c.b16 %v1165, %v1164
          %v1468 = vpack.c.b16 %v1167, %v1166
          %v1469 = vpack.c.b16 %v1169, %v1168
          %v1470 = vpack.c.b16 %v1171, %v1170
          %v1471 = vpack.c.b16 %v1173, %v1172
          %v1472 = vpack.c.b16 %v1175, %v1174
          %v1473 = vpack.c.b16 %v1177, %v1176
          %v1474 = vpack.c.b16 %v1179, %v1178
          %v1475 = vpack.c.b16 %v1181, %v1180
          %v1476 = vpack.c.b16 %v1183, %v1182
          %v1477 = vpack.c.b16 %v1185, %v1184
          %v1478 = vpack.c.b16 %v1187, %v1186
          %v1479 = vpack.c.b16 %v1189, %v1188
          %v1480 = vpack.c.b16 %v1191, %v1190
          %v1481 = vpack.c.b16 %v1193, %v1192
          %v1482 = vpack.c.b16 %v1195, %v1194
          %v1483 = vpack.c.b16 %v1197, %v1196
          %v1484 = vpack.c.b16 %v1199, %v1198
          %v1485 = vpack.c.b16 %v1201, %v1200
          %v1486 = vpack.c.b16 %v1203, %v1202
          %v1487 = vpack.c.b16 %v1205, %v1204
          %v1488 = vpack.c.b16 %v1207, %v1206
          %v1489 = vpack.c.b16 %v1209, %v1208
          %v1490 = vpack.c.b16 %v1211, %v1210
          %v1491 = vpack.c.b16 %v1213, %v1212
          %v1492 = vpack.c.b16 %v1215, %v1214
          %v1493 = vpack.c.b16 %v1217, %v1216
          %v1494 = vpack.c.b16 %v1219, %v1218
          %v1495 = vpack.c.b16 %v1221, %v1220
          %v1496 = vpack.c.b16 %v1223, %v1222
          %v1497 = vpack.c.b16 %v1225, %v1224
          %v1498 = vpack.c.b16 %v1227, %v1226
          %v1499 = vpack.c.b16 %v1229, %v1228
          %v1500 = vpack.c.b16 %v1231, %v1230
          %v1501 = vpack.c.b16 %v1233, %v1232
          %v1502 = vpack.c.b16 %v1235, %v1234
          %v1503 = vpack.c.b16 %v1237, %v1236
          %v1504 = vpack.c.b16 %v1239, %v1238
          %v1505 = vpack.c.b16 %v1241, %v1240
          %v1506 = vpack.c.b16 %v1243, %v1242
          %v1507 = vpack.c.b16 %v1245, %v1244
          %v1508 = vpack.c.b16 %v1247, %v1246
          %v1509 = vpack.c.b16 %v1249, %v1248
          %v1510 = vpack.c.b16 %v1251, %v1250
          %v1511 = vpack.c.b16 %v1253, %v1252
          %v1512 = vpack.c.b16 %v1255, %v1254
          %v1513 = vpack.c.b16 %v1257, %v1256
          %v1514 = vpack.c.b16 %v1259, %v1258
          %v1515 = vpack.c.b16 %v1261, %v1260
          %v1516 = vpack.c.b16 %v1263, %v1262
          %v1517 = vpack.c.b16 %v1265, %v1264
          %v1518 = vpack.c.b16 %v1267, %v1266
          %v1519 = vpack.c.b16 %v1269, %v1268
          %v1520 = vpack.c.b16 %v1271, %v1270
          %v1521 = vpack.c.b16 %v1273, %v1272
          %v1522 = vpack.c.b16 %v1275, %v1274
          %v1523 = vpack.c.b16 %v1277, %v1276
          %v1524 = vpack.c.b16 %v1279, %v1278
          %v1525 = vpack.c.b16 %v1281, %v1280
          %v1526 = vpack.c.b16 %v1283, %v1282
          %v1527 = vpack.c.b16 %v1285, %v1284
          %v1528 = vpack.c.b16 %v1287, %v1286
          %v1529 = vpack.c.b16 %v1289, %v1288
          %v1530 = vpack.c.b16 %v1291, %v1290
          %v1531 = vpack.c.b16 %v1293, %v1292
          %v1532 = vpack.c.b16 %v1295, %v1294
          %v1533 = vpack.c.b16 %v1297, %v1296
          %v1534 = vpack.c.b16 %v1299, %v1298
          %v1535 = vpack.c.b16 %v1301, %v1300
          %v1536 = vpack.c.b16 %v1303, %v1302
          %v1537 = vpack.c.b16 %v1305, %v1304
          %v1538 = vpack.c.b16 %v1307, %v1306
          %v1539 = vpack.c.b16 %v1309, %v1308
          %v1540 = vpack.c.b16 %v1311, %v1310
          %v1541 = vpack.c.b16 %v1313, %v1312
          %v1542 = vpack.c.b16 %v1315, %v1314
          %v1543 = vpack.c.b16 %v1317, %v1316
          %v1544 = vpack.c.b16 %v1319, %v1318
          %v1545 = vpack.c.b16 %v1321, %v1320
          %v1546 = vpack.c.b16 %v1323, %v1322
          %v1547 = vpack.c.b16 %v1325, %v1324
          %v1548 = vpack.c.b16 %v1327, %v1326
          %v1549 = vpack.c.b16 %v1329, %v1328
          %v1550 = vpack.c.b16 %v1331, %v1330
          %v1551 = vpack.c.b16 %v1333, %v1332
          %v1552 = vpack.c.b16 %v1335, %v1334
          %v1553 = vpack.c.b16 %v1337, %v1336
          %v1554 = vpack.c.b16 %v1339, %v1338
          %v1555 = vpack.c.b16 %v1341, %v1340
          %v1556 = vpack.c.b16 %v1343, %v1342
          %v1557 = vpack.c.b16 %v1345, %v1344
          %v1558 = vpack.c.b16 %v1347, %v1346
          %v1559 = vpack.c.b16 %v1349, %v1348
          %v1560 = vpack.c.b16 %v1351, %v1350
          %v1561 = vpack.c.b16 %v1353, %v1352
          %v1562 = vpack.c.b16 %v1355, %v1354
          %v1563 = vpack.c.b16 %v1357, %v1356
          %v1564 = vpack.c.b16 %v1359, %v1358
          %v1565 = vpack.c.b16 %v1361, %v1360
          %v1566 = vpack.c.b16 %v1363, %v1362
          %v1567 = vpack.c.b16 %v1365, %v1364
          %v1568 = vpack.c.b16 %v1367, %v1366
          %v1569 = vpack.c.b16 %v1369, %v1368
          %v1570 = vpack.c.b16 %v1371, %v1370
          %v1571 = vpack.c.b16 %v1373, %v1372
          %v1572 = vpack.c.b16 %v1375, %v1374
          %v1573 = vpack.c.b16 %v1377, %v1376
          %v1574 = vpack.c.b16 %v1379, %v1378
          %v1575 = vpack.c.b16 %v1381, %v1380
          %v1576 = vpack.c.b16 %v1383, %v1382
          %v1577 = vpack.c.b16 %v1385, %v1384
          %v1578 = vpack.c.b16 %v1387, %v1386
          %v1579 = vpack.c.b16 %v1389, %v1388
          %v1580 = vpack.c.b16 %v1391, %v1390
          %v1581 = vpack.c.b16 %v1393, %v1392
          %v1582 = vpack.c.b16 %v1395, %v1394
          %v1583 = vpack.c.b16 %v1397, %v1396
          %v1584 = vpack.c.b16 %v1399, %v1398
          %v1585 = vpack.c.b16 %v1401, %v1400
          %v1586 = vpack.c.b16 %v1403, %v1402
          %v1587 = vpack.c.b16 %v1405, %v1404
          %v1588 = vpack.c.b16 %v1407, %v1406
          %v1589 = vpack.c.b16 %v1409, %v1408
          %v1590 = vpack.c.b16 %v1411, %v1410
          %v1591 = vpack.c.b16 %v1413, %v1412
          %v1592 = vpack.c.b16 %v1415, %v1414
          %v1593 = vpack.c.b16 %v1417, %v1416
          %v1594 = vpack.c.b16 %v1419, %v1418
          %v1595 = vpack.c.b16 %v1421, %v1420
          %v1596 = vpack.c.b16 %v1423, %v1422
          %v1597 = vpack.c.b16 %v1425, %v1424
          %v1598 = vpack.c.b16 %v1427, %v1426
          %v1599 = vpack.c.b16 %v1429, %v1428
          %v1600 = vpack.c.b16 %v1431, %v1430
          %v1601 = vpack.c.b16 %v1433, %v1432
          %v1602 = vpack.c.b16 %v1435, %v1434
          %v1603 = vpack.c.b16 %v1437, %v1436
          %v1604 = vpack.c.b16 %v1439, %v1438
          %vm1770 = vcmask 654336
          %v1772 = vsel %vm1770, %v445, 0
          %1774 = vmatpush.bf16.msra.mxu0 %v1447
          %1775 = vmatpush.bf16.msra.mxu0 %v1446
          %1776 = vmatpush.bf16.msra.mxu0 %v1445
          %1777 = vmatpush.bf16.msra.mxu0 %v1444
          %1778 = vmatpush.bf16.msra.mxu0 %v1443
          %1779 = vmatpush.bf16.msra.mxu0 %v1442
          %1780 = vmatpush.bf16.msra.mxu0 %v1441
          %1781 = vmatpush.bf16.msra.mxu0 %v1440
          %1782 = vmatmul.bf16.gmra.mxu0 %v425
          %v1783 = vpop.f32.mrf.mxu0
          %v1784 = vadd.f32 %v778, %v1783
          %v1785 = vpop.f32.mrf.mxu0
          %1786 = vdwg.mxu0
          %1787 = vmatpush.bf16.msra.mxu0 %v1455
          %1788 = vmatpush.bf16.msra.mxu0 %v1454
          %1789 = vmatpush.bf16.msra.mxu0 %v1453
          %1790 = vmatpush.bf16.msra.mxu0 %v1452
          %1791 = vmatpush.bf16.msra.mxu0 %v1451
          %1792 = vmatpush.bf16.msra.mxu0 %v1450
          %1793 = vmatpush.bf16.msra.mxu0 %v1449
          %1794 = vmatpush.bf16.msra.mxu0 %v1448
          %1795 = vmatmul.bf16.gmra.mxu0 %v426
          %v1796 = vpop.f32.mrf.mxu0
          %v1797 = vadd.f32 %v1784, %v1796
          %v1798 = vpop.f32.mrf.mxu0
          %1799 = vdwg.mxu0
          %1800 = vmatpush.bf16.msra.mxu0 %v1463
          %1801 = vmatpush.bf16.msra.mxu0 %v1462
          %1802 = vmatpush.bf16.msra.mxu0 %v1461
          %1803 = vmatpush.bf16.msra.mxu0 %v1460
          %1804 = vmatpush.bf16.msra.mxu0 %v1459
          %1805 = vmatpush.bf16.msra.mxu0 %v1458
          %1806 = vmatpush.bf16.msra.mxu0 %v1457
          %1807 = vmatpush.bf16.msra.mxu0 %v1456
          %1808 = vmatmul.bf16.gmra.mxu0 %v427
          %v1809 = vpop.f32.mrf.mxu0
          %v1810 = vadd.f32 %v1797, %v1809
          %v1811 = vpop.f32.mrf.mxu0
          %1812 = vdwg.mxu0
          %1813 = vmatpush.bf16.msra.mxu0 %v1471
          %1814 = vmatpush.bf16.msra.mxu0 %v1470
          %1815 = vmatpush.bf16.msra.mxu0 %v1469
          %1816 = vmatpush.bf16.msra.mxu0 %v1468
          %1817 = vmatpush.bf16.msra.mxu0 %v1467
          %1818 = vmatpush.bf16.msra.mxu0 %v1466
          %1819 = vmatpush.bf16.msra.mxu0 %v1465
          %1820 = vmatpush.bf16.msra.mxu0 %v1464
          %1821 = vmatmul.bf16.gmra.mxu0 %v428
          %v1822 = vpop.f32.mrf.mxu0
          %v1823 = vadd.f32 %v1810, %v1822
          %v1824 = vpop.f32.mrf.mxu0
          %1825 = vdwg.mxu0
          %1826 = vmatpush.bf16.msra.mxu0 %v1479
          %1827 = vmatpush.bf16.msra.mxu0 %v1478
          %1828 = vmatpush.bf16.msra.mxu0 %v1477
          %1829 = vmatpush.bf16.msra.mxu0 %v1476
          %1830 = vmatpush.bf16.msra.mxu0 %v1475
          %1831 = vmatpush.bf16.msra.mxu0 %v1474
          %1832 = vmatpush.bf16.msra.mxu0 %v1473
          %1833 = vmatpush.bf16.msra.mxu0 %v1472
          %1834 = vmatmul.bf16.gmra.mxu0 %v429
          %v1835 = vpop.f32.mrf.mxu0
          %v1836 = vadd.f32 %v1823, %v1835
          %v1837 = vpop.f32.mrf.mxu0
          %1838 = vdwg.mxu0
          %1839 = vmatpush.bf16.msra.mxu0 %v1487
          %1840 = vmatpush.bf16.msra.mxu0 %v1486
          %1841 = vmatpush.bf16.msra.mxu0 %v1485
          %1842 = vmatpush.bf16.msra.mxu0 %v1484
          %1843 = vmatpush.bf16.msra.mxu0 %v1483
          %1844 = vmatpush.bf16.msra.mxu0 %v1482
          %1845 = vmatpush.bf16.msra.mxu0 %v1481
          %1846 = vmatpush.bf16.msra.mxu0 %v1480
          %1847 = vmatmul.bf16.gmra.mxu0 %v430
          %v1848 = vpop.f32.mrf.mxu0
          %v1849 = vadd.f32 %v1836, %v1848
          %v1850 = vpop.f32.mrf.mxu0
          %1851 = vdwg.mxu0
          %1852 = vmatpush.bf16.msra.mxu0 %v1495
          %1853 = vmatpush.bf16.msra.mxu0 %v1494
          %1854 = vmatpush.bf16.msra.mxu0 %v1493
          %1855 = vmatpush.bf16.msra.mxu0 %v1492
          %1856 = vmatpush.bf16.msra.mxu0 %v1491
          %1857 = vmatpush.bf16.msra.mxu0 %v1490
          %1858 = vmatpush.bf16.msra.mxu0 %v1489
          %1859 = vmatpush.bf16.msra.mxu0 %v1488
          %1860 = vmatmul.bf16.gmra.mxu0 %v431
          %v1861 = vpop.f32.mrf.mxu0
          %v1862 = vadd.f32 %v1849, %v1861
          %v1863 = vpop.f32.mrf.mxu0
          %1864 = vdwg.mxu0
          %1865 = vmatpush.bf16.msra.mxu0 %v1503
          %1866 = vmatpush.bf16.msra.mxu0 %v1502
          %1867 = vmatpush.bf16.msra.mxu0 %v1501
          %1868 = vmatpush.bf16.msra.mxu0 %v1500
          %1869 = vmatpush.bf16.msra.mxu0 %v1499
          %1870 = vmatpush.bf16.msra.mxu0 %v1498
          %1871 = vmatpush.bf16.msra.mxu0 %v1497
          %1872 = vmatpush.bf16.msra.mxu0 %v1496
          %1873 = vmatmul.bf16.gmra.mxu0 %v432
          %v1874 = vpop.f32.mrf.mxu0
          %v1875 = vadd.f32 %v1862, %v1874
          %v1876 = vpop.f32.mrf.mxu0
          %1877 = vdwg.mxu0
          %1878 = vmatpush.bf16.msra.mxu0 %v1511
          %1879 = vmatpush.bf16.msra.mxu0 %v1510
          %1880 = vmatpush.bf16.msra.mxu0 %v1509
          %1881 = vmatpush.bf16.msra.mxu0 %v1508
          %1882 = vmatpush.bf16.msra.mxu0 %v1507
          %1883 = vmatpush.bf16.msra.mxu0 %v1506
          %1884 = vmatpush.bf16.msra.mxu0 %v1505
          %1885 = vmatpush.bf16.msra.mxu0 %v1504
          %1886 = vmatmul.bf16.gmra.mxu0 %v433
          %v1887 = vpop.f32.mrf.mxu0
          %v1888 = vadd.f32 %v1875, %v1887
          %v1889 = vpop.f32.mrf.mxu0
          %1890 = vdwg.mxu0
          %1891 = vmatpush.bf16.msra.mxu0 %v1519
          %1892 = vmatpush.bf16.msra.mxu0 %v1518
          %1893 = vmatpush.bf16.msra.mxu0 %v1517
          %1894 = vmatpush.bf16.msra.mxu0 %v1516
          %1895 = vmatpush.bf16.msra.mxu0 %v1515
          %1896 = vmatpush.bf16.msra.mxu0 %v1514
          %1897 = vmatpush.bf16.msra.mxu0 %v1513
          %1898 = vmatpush.bf16.msra.mxu0 %v1512
          %1899 = vmatmul.bf16.gmra.mxu0 %v434
          %v1900 = vpop.f32.mrf.mxu0
          %v1901 = vadd.f32 %v1888, %v1900
          %v1902 = vpop.f32.mrf.mxu0
          %1903 = vdwg.mxu0
          %1904 = vmatpush.bf16.msra.mxu0 %v1527
          %1905 = vmatpush.bf16.msra.mxu0 %v1526
          %1906 = vmatpush.bf16.msra.mxu0 %v1525
          %1907 = vmatpush.bf16.msra.mxu0 %v1524
          %1908 = vmatpush.bf16.msra.mxu0 %v1523
          %1909 = vmatpush.bf16.msra.mxu0 %v1522
          %1910 = vmatpush.bf16.msra.mxu0 %v1521
          %1911 = vmatpush.bf16.msra.mxu0 %v1520
          %1912 = vmatmul.bf16.gmra.mxu0 %v435
          %v1913 = vpop.f32.mrf.mxu0
          %v1914 = vadd.f32 %v1901, %v1913
          %v1915 = vpop.f32.mrf.mxu0
          %1916 = vdwg.mxu0
          %1917 = vmatpush.bf16.msra.mxu0 %v1535
          %1918 = vmatpush.bf16.msra.mxu0 %v1534
          %1919 = vmatpush.bf16.msra.mxu0 %v1533
          %1920 = vmatpush.bf16.msra.mxu0 %v1532
          %1921 = vmatpush.bf16.msra.mxu0 %v1531
          %1922 = vmatpush.bf16.msra.mxu0 %v1530
          %1923 = vmatpush.bf16.msra.mxu0 %v1529
          %1924 = vmatpush.bf16.msra.mxu0 %v1528
          %1925 = vmatmul.bf16.gmra.mxu0 %v436
          %v1926 = vpop.f32.mrf.mxu0
          %v1927 = vadd.f32 %v1914, %v1926
          %v1928 = vpop.f32.mrf.mxu0
          %1929 = vdwg.mxu0
          %1930 = vmatpush.bf16.msra.mxu0 %v1543
          %1931 = vmatpush.bf16.msra.mxu0 %v1542
          %1932 = vmatpush.bf16.msra.mxu0 %v1541
          %1933 = vmatpush.bf16.msra.mxu0 %v1540
          %1934 = vmatpush.bf16.msra.mxu0 %v1539
          %1935 = vmatpush.bf16.msra.mxu0 %v1538
          %1936 = vmatpush.bf16.msra.mxu0 %v1537
          %1937 = vmatpush.bf16.msra.mxu0 %v1536
          %1938 = vmatmul.bf16.gmra.mxu0 %v437
          %v1939 = vpop.f32.mrf.mxu0
          %v1940 = vadd.f32 %v1927, %v1939
          %v1941 = vpop.f32.mrf.mxu0
          %1942 = vdwg.mxu0
          %1943 = vmatpush.bf16.msra.mxu0 %v1551
          %1944 = vmatpush.bf16.msra.mxu0 %v1550
          %1945 = vmatpush.bf16.msra.mxu0 %v1549
          %1946 = vmatpush.bf16.msra.mxu0 %v1548
          %1947 = vmatpush.bf16.msra.mxu0 %v1547
          %1948 = vmatpush.bf16.msra.mxu0 %v1546
          %1949 = vmatpush.bf16.msra.mxu0 %v1545
          %1950 = vmatpush.bf16.msra.mxu0 %v1544
          %1951 = vmatmul.bf16.gmra.mxu0 %v438
          %v1952 = vpop.f32.mrf.mxu0
          %v1953 = vadd.f32 %v1940, %v1952
          %v1954 = vpop.f32.mrf.mxu0
          %1955 = vdwg.mxu0
          %1956 = vmatpush.bf16.msra.mxu0 %v1559
          %1957 = vmatpush.bf16.msra.mxu0 %v1558
          %1958 = vmatpush.bf16.msra.mxu0 %v1557
          %1959 = vmatpush.bf16.msra.mxu0 %v1556
          %1960 = vmatpush.bf16.msra.mxu0 %v1555
          %1961 = vmatpush.bf16.msra.mxu0 %v1554
          %1962 = vmatpush.bf16.msra.mxu0 %v1553
          %1963 = vmatpush.bf16.msra.mxu0 %v1552
          %1964 = vmatmul.bf16.gmra.mxu0 %v439
          %v1965 = vpop.f32.mrf.mxu0
          %v1966 = vadd.f32 %v1953, %v1965
          %v1967 = vpop.f32.mrf.mxu0
          %1968 = vdwg.mxu0
          %1969 = vmatpush.bf16.msra.mxu0 %v1567
          %1970 = vmatpush.bf16.msra.mxu0 %v1566
          %1971 = vmatpush.bf16.msra.mxu0 %v1565
          %1972 = vmatpush.bf16.msra.mxu0 %v1564
          %1973 = vmatpush.bf16.msra.mxu0 %v1563
          %1974 = vmatpush.bf16.msra.mxu0 %v1562
          %1975 = vmatpush.bf16.msra.mxu0 %v1561
          %1976 = vmatpush.bf16.msra.mxu0 %v1560
          %1977 = vmatmul.bf16.gmra.mxu0 %v440
          %v1978 = vpop.f32.mrf.mxu0
          %v1979 = vadd.f32 %v1966, %v1978
          %v1980 = vpop.f32.mrf.mxu0
          %1981 = vdwg.mxu0
          %1982 = vmatpush.bf16.msra.mxu0 %v1575
          %1983 = vmatpush.bf16.msra.mxu0 %v1574
          %1984 = vmatpush.bf16.msra.mxu0 %v1573
          %1985 = vmatpush.bf16.msra.mxu0 %v1572
          %1986 = vmatpush.bf16.msra.mxu0 %v1571
          %1987 = vmatpush.bf16.msra.mxu0 %v1570
          %1988 = vmatpush.bf16.msra.mxu0 %v1569
          %1989 = vmatpush.bf16.msra.mxu0 %v1568
          %1990 = vmatmul.bf16.gmra.mxu0 %v441
          %v1991 = vpop.f32.mrf.mxu0
          %v1992 = vadd.f32 %v1979, %v1991
          %v1993 = vpop.f32.mrf.mxu0
          %1994 = vdwg.mxu0
          %1995 = vmatpush.bf16.msra.mxu0 %v1583
          %1996 = vmatpush.bf16.msra.mxu0 %v1582
          %1997 = vmatpush.bf16.msra.mxu0 %v1581
          %1998 = vmatpush.bf16.msra.mxu0 %v1580
          %1999 = vmatpush.bf16.msra.mxu0 %v1579
          %2000 = vmatpush.bf16.msra.mxu0 %v1578
          %2001 = vmatpush.bf16.msra.mxu0 %v1577
          %2002 = vmatpush.bf16.msra.mxu0 %v1576
          %2003 = vmatmul.bf16.gmra.mxu0 %v442
          %v2004 = vpop.f32.mrf.mxu0
          %v2005 = vadd.f32 %v1992, %v2004
          %v2006 = vpop.f32.mrf.mxu0
          %2007 = vdwg.mxu0
          %2008 = vmatpush.bf16.msra.mxu0 %v1591
          %2009 = vmatpush.bf16.msra.mxu0 %v1590
          %2010 = vmatpush.bf16.msra.mxu0 %v1589
          %2011 = vmatpush.bf16.msra.mxu0 %v1588
          %2012 = vmatpush.bf16.msra.mxu0 %v1587
          %2013 = vmatpush.bf16.msra.mxu0 %v1586
          %2014 = vmatpush.bf16.msra.mxu0 %v1585
          %2015 = vmatpush.bf16.msra.mxu0 %v1584
          %2016 = vmatmul.bf16.gmra.mxu0 %v443
          %v2017 = vpop.f32.mrf.mxu0
          %v2018 = vadd.f32 %v2005, %v2017
          %v2019 = vpop.f32.mrf.mxu0
          %2020 = vdwg.mxu0
          %2021 = vmatpush.bf16.msra.mxu0 %v1599
          %2022 = vmatpush.bf16.msra.mxu0 %v1598
          %2023 = vmatpush.bf16.msra.mxu0 %v1597
          %2024 = vmatpush.bf16.msra.mxu0 %v1596
          %2025 = vmatpush.bf16.msra.mxu0 %v1595
          %2026 = vmatpush.bf16.msra.mxu0 %v1594
          %2027 = vmatpush.bf16.msra.mxu0 %v1593
          %2028 = vmatpush.bf16.msra.mxu0 %v1592
          %2029 = vmatmul.bf16.gmra.mxu0 %v444
          %v2030 = vpop.f32.mrf.mxu0
          %v2031 = vadd.f32 %v2018, %v2030
          %v2032 = vpop.f32.mrf.mxu0
          %2033 = vdwg.mxu0
          %2034 = vmatpush.bf16.msra.mxu0 0
          %2035 = vmatpush.bf16.msra.mxu0 0
          %2036 = vmatpush.bf16.msra.mxu0 0
          %2037 = vmatpush.bf16.msra.mxu0 %v1604
          %2038 = vmatpush.bf16.msra.mxu0 %v1603
          %2039 = vmatpush.bf16.msra.mxu0 %v1602
          %2040 = vmatpush.bf16.msra.mxu0 %v1601
          %2041 = vmatpush.bf16.msra.mxu0 %v1600
          %2042 = vmatmul.bf16.gmra.mxu0 %v1772
          %v2043 = vpop.f32.mrf.mxu0
          %v2044 = vadd.f32 %v2031, %v2043
          %v2045 = vpop.f32.mrf.mxu0
          %2046 = vdwg.mxu0
          %v2047 = vlaneseq
          %v2048 = vand.u32 %v2047, 127
          %vm2049 = vcmp.ge.s32.totalorder %v2048, 64
          %vm2050 = vcmask 1041408
          %v2051 = vsel %vm2050, %v2044, 0.0
          %2052 = vadd.xlane.f32.xlu0 %v2051
          %v2053 = vpop.xlane.xlu0 %2052
          %v2054 = vsel %vm2049, 0.0, %v2044
          %v2055 = vsel %vm2050, %v2054, 0.0
          %2056 = vadd.xlane.f32.xlu0 %v2055
          %v2057 = vpop.xlane.xlu0 %2056
          %v2058 = vsub.f32 %v2053, %v2057
          %v2059 = vmul.f32 %v2058, 0.015625
          %v2060 = vmul.f32 %v2057, 0.015625
          %v2061 = vsel %vm2049, %v2059, %v2060
          %v2062 = vsub.f32 %v2044, %v2061
          %v2063 = vmul.f32 %v2062, %v2062
          %v2064 = vsel %vm2050, %v2063, 0.0
          %2065 = vadd.xlane.f32.xlu0 %v2064
          %v2066 = vpop.xlane.xlu0 %2065
          %v2067 = vsel %vm2049, 0.0, %v2063
          %v2068 = vsel %vm2050, %v2067, 0.0
          %2069 = vadd.xlane.f32.xlu0 %v2068
          %v2070 = vpop.xlane.xlu0 %2069
          %v2071 = vsub.f32 %v2066, %v2070
          %v2072 = vmul.f32 %v2071, 0.015625
          %v2073 = vmul.f32 %v2070, 0.015625
          %v2074 = vsel %vm2049, %v2072, %v2073
          %v2075 = vadd.f32 %v2074, 1e-05
          %v2076 = vrsqrt.pop %v2075
          %v2077 = vmul.f32 %v2076, %v2075
          %v2078 = vmul.f32 %v2077, %v2076
          %v2079 = vmul.f32 0.5, %v2078
          %v2080 = vsub.f32 1.5, %v2079
          %v2081 = vmul.f32 %v2076, %v2080
          %vm2082 = vweird.f32 %v2075
          %vm2083 = vweird.f32 %v2076
          %vm2084 = vmor %vm2082, %vm2083
          %v2085 = vsel %vm2084, %v2076, %v2081
          %v2086 = vmul.f32 %v2062, %v2085
          %v2087 = vld [vmem:[%s3] sm:$0x1]
          %v2088 = vperm.slane %v2087, 0
          %v2089 = vmul.f32 %v2086, %v2088
          %v2090 = vld [vmem:[%s3 + $0x1] sm:$0x1]
          %v2091 = vperm.slane %v2090, 0
          %v2092 = vadd.f32 %v2089, %v2091
          %vm2093 = vcmp.ge.f32.partialorder %v2092, 0.0
          %v2094 = vmul.f32 %v2092, 0.01
          %v2095 = vsel %vm2093, %v2092, %v2094
          %v2096 = vpack.c.bf16 %v2095, %v2095
          %2097 = vst [vmem:[#allocation2] sm:$0x1] %v2096
        $region68: #{bottleneck_out_forward.1} parent=43 // pred_fallthru
          _
        %v2098 = vld [vmem:[#allocation2] sm:$0x1]
        %v2099 = vld [vmem:[%s306] sm:$0xff]
        %v2100 = vld [vmem:[%s306 + $0x8] sm:$0xff]
        %v2101 = vld [vmem:[%s306 + $0x10] sm:$0xff]
        %v2102 = vld [vmem:[%s306 + $0x18] sm:$0xff]
        %v2103 = vld [vmem:[%s306 + $0x20] sm:$0xff]
        %v2104 = vld [vmem:[%s306 + $0x28] sm:$0xff]
        %v2105 = vld [vmem:[%s306 + $0x30] sm:$0xff]
        %v2106 = vld [vmem:[%s306 + $0x38] sm:$0xff]
        %v2107 = vld [vmem:[%s306 + $0x40] sm:$0xff]
        %v2108 = vld [vmem:[%s306 + $0x48] sm:$0xff]
        %v2109 = vld [vmem:[%s306 + $0x50] sm:$0xff]
        %v2110 = vld [vmem:[%s306 + $0x58] sm:$0xff]
        %v2111 = vld [vmem:[%s306 + $0x60] sm:$0xff]
        %v2112 = vld [vmem:[%s306 + $0x68] sm:$0xff]
        %v2113 = vld [vmem:[%s306 + $0x70] sm:$0xff]
        %v2114 = vld [vmem:[%s306 + $0x78] sm:$0xff]
        %v2115 = vld [vmem:[%s306 + $0x80] sm:$0xff]
        %v2116 = vld [vmem:[%s306 + $0x88] sm:$0xff]
        %v2117 = vld [vmem:[%s306 + $0x90] sm:$0xff]
        %v2118 = vld [vmem:[%s306 + $0x98] sm:$0xff]
        %v2119 = vld [vmem:[%s306 + $0xa0] sm:$0xff]
        %v2120 = vld [vmem:[%s306 + $0xa8] sm:$0xff]
        %v2121 = vld [vmem:[%s306 + $0xb0] sm:$0xff]
        %v2122 = vld [vmem:[%s306 + $0xb8] sm:$0xff]
        %v2123 = vld [vmem:[%s306 + $0xc0] sm:$0xff]
        %v2124 = vld [vmem:[%s306 + $0xc8] sm:$0xff]
        %v2125 = vld [vmem:[%s306 + $0xd0] sm:$0xff]
        %v2126 = vld [vmem:[%s306 + $0xd8] sm:$0xff]
        %v2127 = vld [vmem:[%s306 + $0xe0] sm:$0xff]
        %v2128 = vld [vmem:[%s306 + $0xe8] sm:$0xff]
        %v2129 = vld [vmem:[%s306 + $0xf0] sm:$0xff]
        %v2130 = vld [vmem:[%s306 + $0xf8] sm:$0xff]
        %v2131 = vld [vmem:[%s316] sm:$0xf]
        %v2133 = vperm.slane %v2131, 0
        %v2134 = vperm.slane %v2131, 1
        %v2135 = vperm.slane %v2131, 2
        %v2136 = vperm.slane %v2131, 3
        %v2173 = vunpack.c.l.b16 %v2099
        %v2174 = vunpack.c.h.b16 %v2099
        %v2175 = vunpack.c.l.b16 %v2100
        %v2176 = vunpack.c.h.b16 %v2100
        %v2177 = vunpack.c.l.b16 %v2101
        %v2178 = vunpack.c.h.b16 %v2101
        %v2179 = vunpack.c.l.b16 %v2102
        %v2180 = vunpack.c.h.b16 %v2102
        %v2181 = vunpack.c.l.b16 %v2103
        %v2182 = vunpack.c.h.b16 %v2103
        %v2183 = vunpack.c.l.b16 %v2104
        %v2184 = vunpack.c.h.b16 %v2104
        %v2185 = vunpack.c.l.b16 %v2105
        %v2186 = vunpack.c.h.b16 %v2105
        %v2187 = vunpack.c.l.b16 %v2106
        %v2188 = vunpack.c.h.b16 %v2106
        %v2189 = vunpack.c.l.b16 %v2107
        %v2190 = vunpack.c.h.b16 %v2107
        %v2191 = vunpack.c.l.b16 %v2108
        %v2192 = vunpack.c.h.b16 %v2108
        %v2193 = vunpack.c.l.b16 %v2109
        %v2194 = vunpack.c.h.b16 %v2109
        %v2195 = vunpack.c.l.b16 %v2110
        %v2196 = vunpack.c.h.b16 %v2110
        %v2197 = vunpack.c.l.b16 %v2111
        %v2198 = vunpack.c.h.b16 %v2111
        %v2199 = vunpack.c.l.b16 %v2112
        %v2200 = vunpack.c.h.b16 %v2112
        %v2201 = vunpack.c.l.b16 %v2113
        %v2202 = vunpack.c.h.b16 %v2113
        %v2203 = vunpack.c.l.b16 %v2114
        %v2204 = vunpack.c.h.b16 %v2114
        %v2205 = vunpack.c.l.b16 %v2115
        %v2206 = vunpack.c.h.b16 %v2115
        %v2207 = vunpack.c.l.b16 %v2116
        %v2208 = vunpack.c.h.b16 %v2116
        %v2209 = vunpack.c.l.b16 %v2117
        %v2210 = vunpack.c.h.b16 %v2117
        %v2211 = vunpack.c.l.b16 %v2118
        %v2212 = vunpack.c.h.b16 %v2118
        %v2213 = vunpack.c.l.b16 %v2119
        %v2214 = vunpack.c.h.b16 %v2119
        %v2215 = vunpack.c.l.b16 %v2120
        %v2216 = vunpack.c.h.b16 %v2120
        %v2217 = vunpack.c.l.b16 %v2121
        %v2218 = vunpack.c.h.b16 %v2121
        %v2219 = vunpack.c.l.b16 %v2122
        %v2220 = vunpack.c.h.b16 %v2122
        %v2221 = vunpack.c.l.b16 %v2123
        %v2222 = vunpack.c.h.b16 %v2123
        %v2223 = vunpack.c.l.b16 %v2124
        %v2224 = vunpack.c.h.b16 %v2124
        %v2225 = vunpack.c.l.b16 %v2125
        %v2226 = vunpack.c.h.b16 %v2125
        %v2227 = vunpack.c.l.b16 %v2126
        %v2228 = vunpack.c.h.b16 %v2126
        %v2229 = vunpack.c.l.b16 %v2127
        %v2230 = vunpack.c.h.b16 %v2127
        %v2231 = vunpack.c.l.b16 %v2128
        %v2232 = vunpack.c.h.b16 %v2128
        %v2233 = vunpack.c.l.b16 %v2129
        %v2234 = vunpack.c.h.b16 %v2129
        %v2235 = vunpack.c.l.b16 %v2130
        %v2236 = vunpack.c.h.b16 %v2130
        %v2237 = vpack.c.b16 %v2177, %v2173
        %v2238 = vpack.c.b16 %v2178, %v2174
        %v2239 = vpack.c.b16 %v2179, %v2175
        %v2240 = vpack.c.b16 %v2180, %v2176
        %v2241 = vpack.c.b16 %v2185, %v2181
        %v2242 = vpack.c.b16 %v2186, %v2182
        %v2243 = vpack.c.b16 %v2187, %v2183
        %v2244 = vpack.c.b16 %v2188, %v2184
        %v2245 = vpack.c.b16 %v2193, %v2189
        %v2246 = vpack.c.b16 %v2194, %v2190
        %v2247 = vpack.c.b16 %v2195, %v2191
        %v2248 = vpack.c.b16 %v2196, %v2192
        %v2249 = vpack.c.b16 %v2201, %v2197
        %v2250 = vpack.c.b16 %v2202, %v2198
        %v2251 = vpack.c.b16 %v2203, %v2199
        %v2252 = vpack.c.b16 %v2204, %v2200
        %v2253 = vpack.c.b16 %v2209, %v2205
        %v2254 = vpack.c.b16 %v2210, %v2206
        %v2255 = vpack.c.b16 %v2211, %v2207
        %v2256 = vpack.c.b16 %v2212, %v2208
        %v2257 = vpack.c.b16 %v2217, %v2213
        %v2258 = vpack.c.b16 %v2218, %v2214
        %v2259 = vpack.c.b16 %v2219, %v2215
        %v2260 = vpack.c.b16 %v2220, %v2216
        %v2261 = vpack.c.b16 %v2225, %v2221
        %v2262 = vpack.c.b16 %v2226, %v2222
        %v2263 = vpack.c.b16 %v2227, %v2223
        %v2264 = vpack.c.b16 %v2228, %v2224
        %v2265 = vpack.c.b16 %v2233, %v2229
        %v2266 = vpack.c.b16 %v2234, %v2230
        %v2267 = vpack.c.b16 %v2235, %v2231
        %v2268 = vpack.c.b16 %v2236, %v2232
        %2301 = vmatpush.bf16.msra.mxu0 %v2265
        %2302 = vmatpush.bf16.msra.mxu0 %v2261
        %2303 = vmatpush.bf16.msra.mxu0 %v2257
        %2304 = vmatpush.bf16.msra.mxu0 %v2253
        %2305 = vmatpush.bf16.msra.mxu0 %v2249
        %2306 = vmatpush.bf16.msra.mxu0 %v2245
        %2307 = vmatpush.bf16.msra.mxu0 %v2241
        %2308 = vmatpush.bf16.msra.mxu0 %v2237
        %2309 = vmatmul.bf16.gmra.mxu0 %v2098
        %v2310 = vpop.f32.mrf.mxu0
        %v2311 = vadd.f32 %v2133, %v2310
        %v2312 = vpop.f32.mrf.mxu0
        %2313 = vdwg.mxu0
        %2314 = vmatpush.bf16.msra.mxu0 %v2266
        %2315 = vmatpush.bf16.msra.mxu0 %v2262
        %2316 = vmatpush.bf16.msra.mxu0 %v2258
        %2317 = vmatpush.bf16.msra.mxu0 %v2254
        %2318 = vmatpush.bf16.msra.mxu0 %v2250
        %2319 = vmatpush.bf16.msra.mxu0 %v2246
        %2320 = vmatpush.bf16.msra.mxu0 %v2242
        %2321 = vmatpush.bf16.msra.mxu0 %v2238
        %2322 = vmatmul.bf16.gmra.mxu0 %v2098
        %v2323 = vpop.f32.mrf.mxu0
        %v2324 = vadd.f32 %v2134, %v2323
        %v2325 = vpop.f32.mrf.mxu0
        %2326 = vdwg.mxu0
        %2327 = vmatpush.bf16.msra.mxu0 %v2267
        %2328 = vmatpush.bf16.msra.mxu0 %v2263
        %2329 = vmatpush.bf16.msra.mxu0 %v2259
        %2330 = vmatpush.bf16.msra.mxu0 %v2255
        %2331 = vmatpush.bf16.msra.mxu0 %v2251
        %2332 = vmatpush.bf16.msra.mxu0 %v2247
        %2333 = vmatpush.bf16.msra.mxu0 %v2243
        %2334 = vmatpush.bf16.msra.mxu0 %v2239
        %2335 = vmatmul.bf16.gmra.mxu0 %v2098
        %v2336 = vpop.f32.mrf.mxu0
        %v2337 = vadd.f32 %v2135, %v2336
        %v2338 = vpop.f32.mrf.mxu0
        %2339 = vdwg.mxu0
        %2340 = vmatpush.bf16.msra.mxu0 %v2268
        %2341 = vmatpush.bf16.msra.mxu0 %v2264
        %2342 = vmatpush.bf16.msra.mxu0 %v2260
        %2343 = vmatpush.bf16.msra.mxu0 %v2256
        %2344 = vmatpush.bf16.msra.mxu0 %v2252
        %2345 = vmatpush.bf16.msra.mxu0 %v2248
        %2346 = vmatpush.bf16.msra.mxu0 %v2244
        %2347 = vmatpush.bf16.msra.mxu0 %v2240
        %2348 = vmatmul.bf16.gmra.mxu0 %v2098
        %v2349 = vpop.f32.mrf.mxu0
        %v2350 = vadd.f32 %v2136, %v2349
        %v2351 = vpop.f32.mrf.mxu0
        %2352 = vdwg.mxu0
        %v2357 = vrot.slane %v2324, 6
        %v2358 = vrot.slane %v2337, 4
        %v2359 = vrot.slane %v2350, 2
        %vm2360 = vcmask 1041408
        %v2361 = vsel %vm2360, %v2311, %v2357
        %vm2362 = vcmask 1045508
        %v2363 = vsel %vm2362, %v2358, %v2359
        %vm2364 = vcmask 1043456
        %v2365 = vsel %vm2364, %v2361, %v2363
        %2367 = vst [vmem:[%s357] sm:$0xff] %v2365
        %s2368 = smul.u32 4, %s22
        %p2369 = scmp.lt.s32.totalorder %s2368, 15
        %s2370 = scalar_select %p2369, %s2368, 15
        %s2371 = smul.addr %s2370, 2
        %s2372 = scalar_lea.vmem %s6, %s2371
        // Predicated region
        $region69: #{bottleneck_out_forward.1} parent=43 // pred_check
          %p2373 = pneg %p176
        $region70: #{bottleneck_out_forward.1} parent=43 // pred_check_branch
          %2375 = sbr.rel (%p2373) target = $region72
        $region71: #{bottleneck_out_forward.1} parent=43 // pred_region
          %s2376 = smul.u32 4, %s22
        $region72: #{bottleneck_out_forward.1} parent=43 // pred_fallthru
          _
      $region44: #{bottleneck_out_forward.1} parent=5 // pred_fallthru
        _
      %p2377 = scmp.le.s32.totalorder 2, %s17
      // Predicated region
      $region73: #{bottleneck_out_forward.1} parent=5 // pred_check
        %p2378 = pneg %p2377
      $region74: #{bottleneck_out_forward.1} parent=5 // pred_check_branch
        %2380 = sbr.rel (%p2378) target = $region76
      $region75: #{bottleneck_out_forward.1} parent=5 // pred_region
        %s2381 = ssub.s32 %s17, 2
        // Predicated region
        $region77: #{bottleneck_out_forward.1} parent=75 // pred_check
          %p2382 = pneg %p182
        $region78: #{bottleneck_out_forward.1} parent=75 // pred_check_branch
          %2384 = sbr.rel (%p2382) target = $region80
        $region79: #{bottleneck_out_forward.1} parent=75 // pred_region
          %s2385 = smul.u32 4, %s23
          %p2386 = scmp.lt.s32.totalorder %s2385, 15
          %s2387 = scalar_select %p2386, %s2385, 15
          %s2388 = smul.addr %s2387, 2
          %s2389 = scalar_lea.vmem %s6, %s2388
        $region80: #{bottleneck_out_forward.1} parent=75 // pred_fallthru
          _
      $region76: #{bottleneck_out_forward.1} parent=5 // pred_fallthru
        _
    $region6: #{bottleneck_out_forward.1} parent=1 // loop_footer
      %s21 = sadd.s32 1, %s17
    $region7: #{bottleneck_out_forward.1} parent=1 // loop_footer_branch
      %16 = sbr.rel target = $region3
    $region8: #{bottleneck_out_forward.1} parent=1 // loop_exit
      _
    %2390 = vsyncpa [#allocation4], 1
    %s2391 = scalar_lea.sflag [#allocation4], 1
    %2392 = vsyncpa %s2391, 1
    %2393 = vsyncpa [#allocation6], 1
    %2394 = vsyncpa [#allocation9], 1
    %s2395 = scalar_lea.sflag [#allocation9], 1
    %2396 = vsyncpa %s2395, 1

</llo_original>
